<compile_context>
chip_gen: v7x
topology: tpu7x:2x2x1
jax: 0.10.0
libtpu: 0.0.40
codegen_flags: <defaults>
</compile_context>

<pallas_src>
import functools

import jax
import jax.numpy as jnp
from jax.experimental import pallas as pl
from jax.experimental.pallas import tpu as pltpu

LANE = 128


def _round_up(x, m):
    return (x + m - 1) // m * m


def cnn_text_kernel(x_ref, wconv_ref, b3_ref, b4_ref, b5_ref, wfc_ref, bfc_ref,
                    o_ref):
    """Fused conv(K=3,4,5) -> tanh -> time-sum -> tanh -> concat -> fc.

    x_ref    : (TN, W, D)   bf16  embedded tokens (batch tile)
    wconv_ref: (D, 12*Cp)   bf16  all 12 conv K-slices, Co zero-padded to Cp
    bK_ref   : (1, Cp)      f32   conv biases (zero-padded)
    wfc_ref  : (3*Cp, Fp)   bf16  fc weight (per-branch rows zero-padded)
    bfc_ref  : (1, Fp)      f32   fc bias (zero-padded)
    o_ref    : (TN, Fp)     f32
    """
    TN, W, D = x_ref.shape
    Cp = b3_ref.shape[-1]

    # One lane-dense MXU matmul covering every conv tap of every branch.
    xf = x_ref[...].reshape(TN * W, D)                         # bf16, M = TN*W
    conv = jnp.dot(xf, wconv_ref[...],
                   preferred_element_type=jnp.float32)         # (TN*W, 12*Cp)
    conv = conv.reshape(TN, W, 12 * Cp)

    # Valid-position mask template (time index runs along sublanes).
    t_idx = jax.lax.broadcasted_iota(jnp.int32, (W, Cp), 0)

    feats = []
    off = 0
    for K, b_ref in ((3, b3_ref), (4, b4_ref), (5, b5_ref)):
        L = W - K + 1
        # conv_K[n, l, c] = b_K[c] + sum_k x[n, l+k, :] . w_K[k]
        # reconstructed with XLU sublane rolls of the fused matmul output.
        acc = conv[:, :, off * Cp:(off + 1) * Cp]              # k = 0 tap
        for k in range(1, K):
            part = conv[:, :, (off + k) * Cp:(off + k + 1) * Cp]
            acc = acc + pltpu.roll(part, shift=W - k, axis=1)  # y[t] = part[t+k]
        acc = acc + b_ref[...].reshape(1, 1, Cp)               # bias BEFORE tanh
        # L * avg_pool1d(tanh(conv), L) == sum over the L valid positions.
        mask = (t_idx < L).astype(jnp.float32)                 # (W, Cp)
        s = jnp.sum(jnp.tanh(acc) * mask[None], axis=1)        # (TN, Cp)
        feats.append(jnp.tanh(s))
        off += K

    feat = jnp.concatenate(feats, axis=1)                      # (TN, 3*Cp)
    out = jnp.dot(feat.astype(wfc_ref.dtype), wfc_ref[...],
                  preferred_element_type=jnp.float32)          # (TN, Fp)
    o_ref[...] = out + bfc_ref[...]


def pack_params(params):
    """Pad / repack PyTorch-layout params into lane-dense (x128) blocks."""
    Co = params["b3"].shape[-1]
    F = params["bfc"].shape[-1]
    D = params["w3"].shape[1]
    Cp = _round_up(Co, LANE)
    Fp = _round_up(F, LANE)

    def pad_conv(w):                                   # (K, D, Co) -> (K, D, Cp)
        return jnp.pad(w, ((0, 0), (0, 0), (0, Cp - w.shape[-1])))

    w_all = jnp.concatenate(
        [pad_conv(params["w3"]), pad_conv(params["w4"]), pad_conv(params["w5"])],
        axis=0)                                        # (12, D, Cp)
    w_all = jnp.transpose(w_all, (1, 0, 2)).reshape(D, 12 * Cp)
    w_all = w_all.astype(jnp.bfloat16)

    def pad_bias(b):                                   # (1, Co) -> (1, Cp)
        return jnp.pad(b, ((0, 0), (0, Cp - b.shape[-1]))).astype(jnp.float32)

    # fc weight: one row block per branch, each padded Co->Cp with ZERO rows so
    # the padded feature lanes cannot contaminate the output.
    wfc = params["wfc"]                                # (3*Co, F)
    blocks = [jnp.pad(wfc[i * Co:(i + 1) * Co], ((0, Cp - Co), (0, Fp - F)))
              for i in range(3)]
    wfc_p = jnp.concatenate(blocks, axis=0).astype(jnp.bfloat16)   # (3*Cp, Fp)
    bfc_p = jnp.pad(params["bfc"], ((0, 0), (0, Fp - F))).astype(jnp.float32)

    return dict(w_all=w_all, b3=pad_bias(params["b3"]), b4=pad_bias(params["b4"]),
                b5=pad_bias(params["b5"]), wfc=wfc_p, bfc=bfc_p,
                Co=Co, F=F, Cp=Cp, Fp=Fp)


def cnn_text_forward(tokens, params, *, block_n=None):
    """Forward pass of CNN_Text. tokens: (N, W) int32 -> (N, 100) f32."""
    # Embedding lookup (gather) stays in plain JAX glue.
    # TODO(synk): fuse the embedding gather into the kernel (PrefetchScalarGridSpec
    # token ids + per-row DMA from an HBM-resident table) to avoid materializing
    # and re-reading the (N, W, D) activation in HBM.
    x = params["embed"][tokens].astype(jnp.bfloat16)           # (N, W, D)
    N, W = tokens.shape
    D = x.shape[-1]

    p = pack_params(params)
    Cp, Fp, F = p["Cp"], p["Fp"], p["F"]

    # Batch tile sized so the (TN*W, 12*Cp) f32 conv intermediate stays well
    # under the scoped-VMEM limit on every chip (v5e 16 MiB default scoped,
    # v7x 64 MiB physical).
    if block_n is None:
        block_n = 128
        budget = 8 * 2**20
        while block_n > 8 and block_n * W * 12 * Cp * 4 > budget:
            block_n //= 2
    block_n = max(8, min(block_n, _round_up(N, 8)))
    n_pad = _round_up(N, block_n)
    if n_pad != N:
        x = jnp.pad(x, ((0, n_pad - N), (0, 0), (0, 0)))
    grid = (n_pad // block_n,)

    # Rough VMEM accounting (double-buffered x, resident weights, conv
    # intermediate + branch accumulators) with 2x headroom, capped for v7x.
    est = (2 * block_n * W * D * 2
           + (D * 12 * Cp + 3 * Cp * Fp) * 2 + 5 * Cp * 4
           + block_n * W * 12 * Cp * 4
           + 2 * block_n * W * Cp * 4
           + 2 * block_n * Fp * 4)
    vmem_limit = int(min(48 * 2**20, max(32 * 2**20, 2 * est)))

    flops = 2 * n_pad * W * D * 12 * Cp + 2 * n_pad * 3 * Cp * Fp
    transcendentals = n_pad * Cp * (3 * W + 3)
    bytes_accessed = (n_pad * W * D * 2 + (D * 12 * Cp + 3 * Cp * Fp) * 2
                      + n_pad * Fp * 4)

    const = lambda *_: (0, 0)
    out = pl.pallas_call(
        cnn_text_kernel,
        out_shape=jax.ShapeDtypeStruct((n_pad, Fp), jnp.float32),
        grid=grid,
        in_specs=[
            pl.BlockSpec((block_n, W, D), lambda i: (i, 0, 0)),
            pl.BlockSpec((D, 12 * Cp), const),
            pl.BlockSpec((1, Cp), const),
            pl.BlockSpec((1, Cp), const),
            pl.BlockSpec((1, Cp), const),
            pl.BlockSpec((3 * Cp, Fp), const),
            pl.BlockSpec((1, Fp), const),
        ],
        out_specs=pl.BlockSpec((block_n, Fp), lambda i: (i, 0)),
        compiler_params=pltpu.CompilerParams(
            dimension_semantics=("parallel",),
            vmem_limit_bytes=vmem_limit),
        cost_estimate=pl.CostEstimate(
            flops=flops, transcendentals=transcendentals,
            bytes_accessed=bytes_accessed),
    )(x, p["w_all"], p["b3"], p["b4"], p["b5"], p["wfc"], p["bfc"])

    return out[:N, :F]


def reference_forward(tokens, params):
    """Pure-JAX f32 reference mirroring the PyTorch forward."""
    x = params["embed"][tokens].astype(jnp.float32)            # (N, W, D)
    N, W, D = x.shape
    feats = []
    for K, wk, bk in ((3, params["w3"], params["b3"]),
                      (4, params["w4"], params["b4"]),
                      (5, params["w5"], params["b5"])):
        L = W - K + 1
        acc = jnp.zeros((N, L, wk.shape[2])) + bk[None]
        for k in range(K):
            acc = acc + jnp.einsum('nld,dc->nlc', x[:, k:k + L, :], wk[k])
        feats.append(jnp.tanh(jnp.sum(jnp.tanh(acc), axis=1)))
    feat = jnp.concatenate(feats, axis=1)                      # (N, 300)
    return feat @ params["wfc"] + params["bfc"]                # (N, 100)


def make_params(key, V, D, Co):
    ks = jax.random.split(key, 9)
    return {
        "embed": jax.random.normal(ks[0], (V, D), jnp.float32) * 0.1,
        "w3": jax.random.normal(ks[1], (3, D, Co), jnp.float32) * 0.05,
        "b3": jax.random.normal(ks[2], (1, Co), jnp.float32) * 0.05,
        "w4": jax.random.normal(ks[3], (4, D, Co), jnp.float32) * 0.05,
        "b4": jax.random.normal(ks[4], (1, Co), jnp.float32) * 0.05,
        "w5": jax.random.normal(ks[5], (5, D, Co), jnp.float32) * 0.05,
        "b5": jax.random.normal(ks[6], (1, Co), jnp.float32) * 0.05,
        # nn.Linear(300, 100): stored as weight.T -> (300, 100)
        "wfc": jax.random.normal(ks[7], (3 * Co, 100), jnp.float32) * 0.05,
        "bfc": jax.random.normal(ks[8], (1, 100), jnp.float32) * 0.05,
    }


if __name__ == "__main__":
    # fc1 = Linear(300, 100) hard-codes kernel_num * len(Ks) == 300
    #   -> Co = 100, Ks = [3, 4, 5].
    V, D, Co = 50, 32, 100
    N, W = 2, 16

    key = jax.random.PRNGKey(0)
    pkey, tkey = jax.random.split(key)
    params = make_params(pkey, V, D, Co)
    tokens = jax.random.randint(tkey, (N, W), 0, V, dtype=jnp.int32)

    fwd = jax.jit(functools.partial(cnn_text_forward))
    out = jax.block_until_ready(fwd(tokens, params))
    ref = jax.block_until_ready(reference_forward(tokens, params))

    assert out.shape == (N, 100) and out.dtype == jnp.float32
    # bf16 matmul path vs f32 reference: loose-but-safe tolerance.
    assert jnp.allclose(out, ref, atol=1e-2, rtol=1e-2), (
        float(jnp.max(jnp.abs(out - ref))))
    print("KERNEL_OK")
</pallas_src>

<mosaic_0001>
module attributes {stable_mosaic.version = 11 : i64} {
  func.func @cnn_text_kernel(%arg0: i32, %arg1: memref<8x16x32xbf16, #tpu.memory_space<vmem>>, %arg2: memref<32x1536xbf16, #tpu.memory_space<vmem>>, %arg3: memref<1x128xf32, #tpu.memory_space<vmem>>, %arg4: memref<1x128xf32, #tpu.memory_space<vmem>>, %arg5: memref<1x128xf32, #tpu.memory_space<vmem>>, %arg6: memref<384x128xbf16, #tpu.memory_space<vmem>>, %arg7: memref<1x128xf32, #tpu.memory_space<vmem>>, %arg8: memref<8x128xf32, #tpu.memory_space<vmem>>) attributes {dimension_semantics = [#tpu.dimension_semantics<parallel>], iteration_bounds = array<i64: 1>, scalar_prefetch = 0 : i64, scratch_operands = 0 : i64, tpu.core_type = #tpu.core_type<tc>, window_params = [{transform_indices = @transform_0, window_bounds = array<i64: 8, 16, 32>}, {pipeline_mode = #tpu.pipeline_mode<synchronous>, transform_indices = @transform_1, window_bounds = array<i64: 32, 1536>}, {pipeline_mode = #tpu.pipeline_mode<synchronous>, transform_indices = @transform_2, window_bounds = array<i64: 1, 128>}, {pipeline_mode = #tpu.pipeline_mode<synchronous>, transform_indices = @transform_3, window_bounds = array<i64: 1, 128>}, {pipeline_mode = #tpu.pipeline_mode<synchronous>, transform_indices = @transform_4, window_bounds = array<i64: 1, 128>}, {pipeline_mode = #tpu.pipeline_mode<synchronous>, transform_indices = @transform_5, window_bounds = array<i64: 384, 128>}, {pipeline_mode = #tpu.pipeline_mode<synchronous>, transform_indices = @transform_6, window_bounds = array<i64: 1, 128>}, {transform_indices = @transform_7, window_bounds = array<i64: 8, 128>}]} {
    %c0 = arith.constant 0 : index
    %c0_0 = arith.constant 0 : index
    %c0_1 = arith.constant 0 : index
    %0 = vector.load %arg1[%c0, %c0_0, %c0_1] : memref<8x16x32xbf16, #tpu.memory_space<vmem>>, vector<8x16x32xbf16>
    %1 = vector.shape_cast %0 : vector<8x16x32xbf16> to vector<128x32xbf16>
    %c0_2 = arith.constant 0 : index
    %c0_3 = arith.constant 0 : index
    %2 = vector.load %arg2[%c0_2, %c0_3] : memref<32x1536xbf16, #tpu.memory_space<vmem>>, vector<32x1536xbf16>
    %cst = arith.constant dense<0.000000e+00> : vector<128x1536xf32>
    %3 = tpu.matmul %1, %2, %cst {dimension_numbers = #tpu.dot_dimension_numbers<[1], [0], [0], [1], [0, 0, 1, 1], [], []>} : vector<128x32xbf16>, vector<32x1536xbf16>, vector<128x1536xf32> -> vector<128x1536xf32>
    %4 = vector.shape_cast %3 : vector<128x1536xf32> to vector<8x16x1536xf32>
    %5 = tpu.iota {dimensions = array<i32: 0>} : vector<16x128xi32>
    %6 = vector.extract_strided_slice %4 {offsets = [0, 0, 0], sizes = [8, 16, 128], strides = [1, 1, 1]} : vector<8x16x1536xf32> to vector<8x16x128xf32>
    %7 = vector.extract_strided_slice %4 {offsets = [0, 0, 128], sizes = [8, 16, 128], strides = [1, 1, 1]} : vector<8x16x1536xf32> to vector<8x16x128xf32>
    %c15_i32 = arith.constant 15 : i32
    %8 = tpu.dynamic_rotate %7 by %c15_i32 dim 1 : vector<8x16x128xf32>, i32 -> vector<8x16x128xf32>
    %9 = arith.addf %6, %8 : vector<8x16x128xf32>
    %10 = vector.extract_strided_slice %4 {offsets = [0, 0, 256], sizes = [8, 16, 128], strides = [1, 1, 1]} : vector<8x16x1536xf32> to vector<8x16x128xf32>
    %c14_i32 = arith.constant 14 : i32
    %11 = tpu.dynamic_rotate %10 by %c14_i32 dim 1 : vector<8x16x128xf32>, i32 -> vector<8x16x128xf32>
    %12 = arith.addf %9, %11 : vector<8x16x128xf32>
    %c0_4 = arith.constant 0 : index
    %c0_5 = arith.constant 0 : index
    %13 = vector.load %arg3[%c0_4, %c0_5] : memref<1x128xf32, #tpu.memory_space<vmem>>, vector<1x128xf32>
    %14 = vector.shape_cast %13 : vector<1x128xf32> to vector<1x1x128xf32>
    %15 = vector.broadcast %14 : vector<1x1x128xf32> to vector<8x16x128xf32>
    %16 = arith.addf %12, %15 : vector<8x16x128xf32>
    %c14_i32_6 = arith.constant 14 : i32
    %17 = vector.broadcast %c14_i32_6 : i32 to vector<16x128xi32>
    %18 = arith.cmpi slt, %5, %17 : vector<16x128xi32>
    %19 = arith.extui %18 : vector<16x128xi1> to vector<16x128xi32>
    %20 = arith.sitofp %19 : vector<16x128xi32> to vector<16x128xf32>
    %21 = math.tanh %16 : vector<8x16x128xf32>
    %22 = vector.shape_cast %20 : vector<16x128xf32> to vector<1x16x128xf32>
    %23 = vector.broadcast %22 : vector<1x16x128xf32> to vector<8x16x128xf32>
    %24 = arith.mulf %21, %23 : vector<8x16x128xf32>
    %cst_7 = arith.constant dense<0.000000e+00> : vector<8x128xf32>
    %25 = vector.multi_reduction <add>, %24, %cst_7 [1] : vector<8x16x128xf32> to vector<8x128xf32>
    %26 = math.tanh %25 : vector<8x128xf32>
    %27 = vector.extract_strided_slice %4 {offsets = [0, 0, 384], sizes = [8, 16, 128], strides = [1, 1, 1]} : vector<8x16x1536xf32> to vector<8x16x128xf32>
    %28 = vector.extract_strided_slice %4 {offsets = [0, 0, 512], sizes = [8, 16, 128], strides = [1, 1, 1]} : vector<8x16x1536xf32> to vector<8x16x128xf32>
    %c15_i32_8 = arith.constant 15 : i32
    %29 = tpu.dynamic_rotate %28 by %c15_i32_8 dim 1 : vector<8x16x128xf32>, i32 -> vector<8x16x128xf32>
    %30 = arith.addf %27, %29 : vector<8x16x128xf32>
    %31 = vector.extract_strided_slice %4 {offsets = [0, 0, 640], sizes = [8, 16, 128], strides = [1, 1, 1]} : vector<8x16x1536xf32> to vector<8x16x128xf32>
    %c14_i32_9 = arith.constant 14 : i32
    %32 = tpu.dynamic_rotate %31 by %c14_i32_9 dim 1 : vector<8x16x128xf32>, i32 -> vector<8x16x128xf32>
    %33 = arith.addf %30, %32 : vector<8x16x128xf32>
    %34 = vector.extract_strided_slice %4 {offsets = [0, 0, 768], sizes = [8, 16, 128], strides = [1, 1, 1]} : vector<8x16x1536xf32> to vector<8x16x128xf32>
    %c13_i32 = arith.constant 13 : i32
    %35 = tpu.dynamic_rotate %34 by %c13_i32 dim 1 : vector<8x16x128xf32>, i32 -> vector<8x16x128xf32>
    %36 = arith.addf %33, %35 : vector<8x16x128xf32>
    %c0_10 = arith.constant 0 : index
    %c0_11 = arith.constant 0 : index
    %37 = vector.load %arg4[%c0_10, %c0_11] : memref<1x128xf32, #tpu.memory_space<vmem>>, vector<1x128xf32>
    %38 = vector.shape_cast %37 : vector<1x128xf32> to vector<1x1x128xf32>
    %39 = vector.broadcast %38 : vector<1x1x128xf32> to vector<8x16x128xf32>
    %40 = arith.addf %36, %39 : vector<8x16x128xf32>
    %c13_i32_12 = arith.constant 13 : i32
    %41 = vector.broadcast %c13_i32_12 : i32 to vector<16x128xi32>
    %42 = arith.cmpi slt, %5, %41 : vector<16x128xi32>
    %43 = arith.extui %42 : vector<16x128xi1> to vector<16x128xi32>
    %44 = arith.sitofp %43 : vector<16x128xi32> to vector<16x128xf32>
    %45 = math.tanh %40 : vector<8x16x128xf32>
    %46 = vector.shape_cast %44 : vector<16x128xf32> to vector<1x16x128xf32>
    %47 = vector.broadcast %46 : vector<1x16x128xf32> to vector<8x16x128xf32>
    %48 = arith.mulf %45, %47 : vector<8x16x128xf32>
    %cst_13 = arith.constant dense<0.000000e+00> : vector<8x128xf32>
    %49 = vector.multi_reduction <add>, %48, %cst_13 [1] : vector<8x16x128xf32> to vector<8x128xf32>
    %50 = math.tanh %49 : vector<8x128xf32>
    %51 = vector.extract_strided_slice %4 {offsets = [0, 0, 896], sizes = [8, 16, 128], strides = [1, 1, 1]} : vector<8x16x1536xf32> to vector<8x16x128xf32>
    %52 = vector.extract_strided_slice %4 {offsets = [0, 0, 1024], sizes = [8, 16, 128], strides = [1, 1, 1]} : vector<8x16x1536xf32> to vector<8x16x128xf32>
    %c15_i32_14 = arith.constant 15 : i32
    %53 = tpu.dynamic_rotate %52 by %c15_i32_14 dim 1 : vector<8x16x128xf32>, i32 -> vector<8x16x128xf32>
    %54 = arith.addf %51, %53 : vector<8x16x128xf32>
    %55 = vector.extract_strided_slice %4 {offsets = [0, 0, 1152], sizes = [8, 16, 128], strides = [1, 1, 1]} : vector<8x16x1536xf32> to vector<8x16x128xf32>
    %c14_i32_15 = arith.constant 14 : i32
    %56 = tpu.dynamic_rotate %55 by %c14_i32_15 dim 1 : vector<8x16x128xf32>, i32 -> vector<8x16x128xf32>
    %57 = arith.addf %54, %56 : vector<8x16x128xf32>
    %58 = vector.extract_strided_slice %4 {offsets = [0, 0, 1280], sizes = [8, 16, 128], strides = [1, 1, 1]} : vector<8x16x1536xf32> to vector<8x16x128xf32>
    %c13_i32_16 = arith.constant 13 : i32
    %59 = tpu.dynamic_rotate %58 by %c13_i32_16 dim 1 : vector<8x16x128xf32>, i32 -> vector<8x16x128xf32>
    %60 = arith.addf %57, %59 : vector<8x16x128xf32>
    %61 = vector.extract_strided_slice %4 {offsets = [0, 0, 1408], sizes = [8, 16, 128], strides = [1, 1, 1]} : vector<8x16x1536xf32> to vector<8x16x128xf32>
    %c12_i32 = arith.constant 12 : i32
    %62 = tpu.dynamic_rotate %61 by %c12_i32 dim 1 : vector<8x16x128xf32>, i32 -> vector<8x16x128xf32>
    %63 = arith.addf %60, %62 : vector<8x16x128xf32>
    %c0_17 = arith.constant 0 : index
    %c0_18 = arith.constant 0 : index
    %64 = vector.load %arg5[%c0_17, %c0_18] : memref<1x128xf32, #tpu.memory_space<vmem>>, vector<1x128xf32>
    %65 = vector.shape_cast %64 : vector<1x128xf32> to vector<1x1x128xf32>
    %66 = vector.broadcast %65 : vector<1x1x128xf32> to vector<8x16x128xf32>
    %67 = arith.addf %63, %66 : vector<8x16x128xf32>
    %c12_i32_19 = arith.constant 12 : i32
    %68 = vector.broadcast %c12_i32_19 : i32 to vector<16x128xi32>
    %69 = arith.cmpi slt, %5, %68 : vector<16x128xi32>
    %70 = arith.extui %69 : vector<16x128xi1> to vector<16x128xi32>
    %71 = arith.sitofp %70 : vector<16x128xi32> to vector<16x128xf32>
    %72 = math.tanh %67 : vector<8x16x128xf32>
    %73 = vector.shape_cast %71 : vector<16x128xf32> to vector<1x16x128xf32>
    %74 = vector.broadcast %73 : vector<1x16x128xf32> to vector<8x16x128xf32>
    %75 = arith.mulf %72, %74 : vector<8x16x128xf32>
    %cst_20 = arith.constant dense<0.000000e+00> : vector<8x128xf32>
    %76 = vector.multi_reduction <add>, %75, %cst_20 [1] : vector<8x16x128xf32> to vector<8x128xf32>
    %77 = math.tanh %76 : vector<8x128xf32>
    %78 = tpu.concatenate %26, %50, %77 in 1 : vector<8x128xf32>, vector<8x128xf32>, vector<8x128xf32> -> vector<8x384xf32>
    %79 = arith.truncf %78 : vector<8x384xf32> to vector<8x384xbf16>
    %c0_21 = arith.constant 0 : index
    %c0_22 = arith.constant 0 : index
    %80 = vector.load %arg6[%c0_21, %c0_22] : memref<384x128xbf16, #tpu.memory_space<vmem>>, vector<384x128xbf16>
    %cst_23 = arith.constant dense<0.000000e+00> : vector<8x128xf32>
    %81 = tpu.matmul %79, %80, %cst_23 {dimension_numbers = #tpu.dot_dimension_numbers<[1], [0], [0], [1], [0, 0, 1, 1], [], []>} : vector<8x384xbf16>, vector<384x128xbf16>, vector<8x128xf32> -> vector<8x128xf32>
    %c0_24 = arith.constant 0 : index
    %c0_25 = arith.constant 0 : index
    %82 = vector.load %arg7[%c0_24, %c0_25] : memref<1x128xf32, #tpu.memory_space<vmem>>, vector<1x128xf32>
    %83 = vector.broadcast %82 : vector<1x128xf32> to vector<8x128xf32>
    %84 = arith.addf %81, %83 : vector<8x128xf32>
    %c0_26 = arith.constant 0 : index
    %c0_27 = arith.constant 0 : index
    %85 = vector.load %arg8[%c0_26, %c0_27] : memref<8x128xf32, #tpu.memory_space<vmem>>, vector<8x128xf32>
    tpu.vector_store %arg8[%c0_26, %c0_27], %84 {strides = array<i32>} : memref<8x128xf32, #tpu.memory_space<vmem>>, vector<8x128xf32>,
    return
  }
  func.func @transform_0(%arg0: i32) -> (i32, i32, i32) {
    %c0_i32 = arith.constant 0 : i32
    %c0_i32_0 = arith.constant 0 : i32
    %c0_i32_1 = arith.constant 0 : i32
    return %arg0, %c0_i32, %c0_i32_0 : i32, i32, i32
  }
  func.func @transform_1(%arg0: i32) -> (i32, i32) {
    %c0_i32 = arith.constant 0 : i32
    %c0_i32_0 = arith.constant 0 : i32
    %c0_i32_1 = arith.constant 0 : i32
    return %c0_i32, %c0_i32_0 : i32, i32
  }
  func.func @transform_2(%arg0: i32) -> (i32, i32) {
    %c0_i32 = arith.constant 0 : i32
    %c0_i32_0 = arith.constant 0 : i32
    %c0_i32_1 = arith.constant 0 : i32
    return %c0_i32, %c0_i32_0 : i32, i32
  }
  func.func @transform_3(%arg0: i32) -> (i32, i32) {
    %c0_i32 = arith.constant 0 : i32
    %c0_i32_0 = arith.constant 0 : i32
    %c0_i32_1 = arith.constant 0 : i32
    return %c0_i32, %c0_i32_0 : i32, i32
  }
  func.func @transform_4(%arg0: i32) -> (i32, i32) {
    %c0_i32 = arith.constant 0 : i32
    %c0_i32_0 = arith.constant 0 : i32
    %c0_i32_1 = arith.constant 0 : i32
    return %c0_i32, %c0_i32_0 : i32, i32
  }
  func.func @transform_5(%arg0: i32) -> (i32, i32) {
    %c0_i32 = arith.constant 0 : i32
    %c0_i32_0 = arith.constant 0 : i32
    %c0_i32_1 = arith.constant 0 : i32
    return %c0_i32, %c0_i32_0 : i32, i32
  }
  func.func @transform_6(%arg0: i32) -> (i32, i32) {
    %c0_i32 = arith.constant 0 : i32
    %c0_i32_0 = arith.constant 0 : i32
    %c0_i32_1 = arith.constant 0 : i32
    return %c0_i32, %c0_i32_0 : i32, i32
  }
  func.func @transform_7(%arg0: i32) -> (i32, i32) {
    %c0_i32 = arith.constant 0 : i32
    %c0_i32_0 = arith.constant 0 : i32
    return %arg0, %c0_i32 : i32, i32
  }
}

</mosaic_0001>

<llo_original>
// kernel: cnn_text_forward.1
$region0: #{cnn_text_forward.1}
  #allocation0 [shape = 'u32[]', space=smem, size = 0x4, offset = 0x4, fixed_abs, tag = 'smem constant byte address 0x4 - core index']
  #allocation1 [shape = 'u32[144,128]{1,0:T(1,128)}', space=vmem, size = 0x12000, scoped, tag = 'internal scratch']
  %s0 = inlined_call_operand.vmem [shape: bf16[8,16,32], index: 0, kind: input, shape index: {}]
  %s1 = inlined_call_operand.vmem [shape: bf16[32,1536], index: 1, kind: input, shape index: {}]
  %s2 = inlined_call_operand.vmem [shape: f32[1,128], index: 2, kind: input, shape index: {}]
  %s3 = inlined_call_operand.vmem [shape: f32[1,128], index: 3, kind: input, shape index: {}]
  %s4 = inlined_call_operand.vmem [shape: f32[1,128], index: 4, kind: input, shape index: {}]
  %s5 = inlined_call_operand.vmem [shape: bf16[384,128], index: 5, kind: input, shape index: {}]
  %s6 = inlined_call_operand.vmem [shape: f32[1,128], index: 6, kind: input, shape index: {}]
  %s7 = inlined_call_operand.vmem [shape: f32[8,128], index: 7, kind: output, shape index: {}]
  %s8 = sld [smem:[#allocation0]]
  $region38: #{cnn_text_forward.1} parent=0
    _
  %s10 = ssub.s32 1, %s8
  %s11 = scalar_select 0, %s10, %s8
  // Predicated region
  $region2: #{cnn_text_forward.1} parent=0 // pred_check
    _
  $region3: #{cnn_text_forward.1} parent=0 // pred_check_branch
    %13 = sbr.rel (0) target = $region5
  $region4: #{cnn_text_forward.1} parent=0 // pred_region
    _
  $region5: #{cnn_text_forward.1} parent=0 // pred_fallthru
    _
  // Predicated region
  $region6: #{cnn_text_forward.1} parent=0 // pred_check
    _
  $region7: #{cnn_text_forward.1} parent=0 // pred_check_branch
    %15 = sbr.rel (0) target = $region9
  $region8: #{cnn_text_forward.1} parent=0 // pred_region
    _
  $region9: #{cnn_text_forward.1} parent=0 // pred_fallthru
    _
  // Predicated region
  $region10: #{cnn_text_forward.1} parent=0 // pred_check
    _
  $region11: #{cnn_text_forward.1} parent=0 // pred_check_branch
    %17 = sbr.rel (0) target = $region13
  $region12: #{cnn_text_forward.1} parent=0 // pred_region
    _
  $region13: #{cnn_text_forward.1} parent=0 // pred_fallthru
    _
  // Predicated region
  $region14: #{cnn_text_forward.1} parent=0 // pred_check
    _
  $region15: #{cnn_text_forward.1} parent=0 // pred_check_branch
    %19 = sbr.rel (0) target = $region17
  $region16: #{cnn_text_forward.1} parent=0 // pred_region
    _
  $region17: #{cnn_text_forward.1} parent=0 // pred_fallthru
    _
  // Predicated region
  $region18: #{cnn_text_forward.1} parent=0 // pred_check
    _
  $region19: #{cnn_text_forward.1} parent=0 // pred_check_branch
    %21 = sbr.rel (0) target = $region21
  $region20: #{cnn_text_forward.1} parent=0 // pred_region
    _
  $region21: #{cnn_text_forward.1} parent=0 // pred_fallthru
    _
  // Predicated region
  $region22: #{cnn_text_forward.1} parent=0 // pred_check
    _
  $region23: #{cnn_text_forward.1} parent=0 // pred_check_branch
    %23 = sbr.rel (0) target = $region25
  $region24: #{cnn_text_forward.1} parent=0 // pred_region
    _
  $region25: #{cnn_text_forward.1} parent=0 // pred_fallthru
    _
  // Predicated region
  $region26: #{cnn_text_forward.1} parent=0 // pred_check
    _
  $region27: #{cnn_text_forward.1} parent=0 // pred_check_branch
    %25 = sbr.rel (0) target = $region29
  $region28: #{cnn_text_forward.1} parent=0 // pred_region
    _
  $region29: #{cnn_text_forward.1} parent=0 // pred_fallthru
    _
  %v27 = vld [vmem:[%s0] sm:$0xf]
  %v28 = vld [vmem:[%s0 + $0x4] sm:$0xf]
  %v29 = vld [vmem:[%s0 + $0x8] sm:$0xf]
  %v30 = vld [vmem:[%s0 + $0xc] sm:$0xf]
  %v31 = vld [vmem:[%s0 + $0x10] sm:$0xf]
  %v32 = vld [vmem:[%s0 + $0x14] sm:$0xf]
  %v33 = vld [vmem:[%s0 + $0x18] sm:$0xf]
  %v34 = vld [vmem:[%s0 + $0x1c] sm:$0xf]
  %v35 = vld [vmem:[%s0 + $0x20] sm:$0xf]
  %v36 = vld [vmem:[%s0 + $0x24] sm:$0xf]
  %v37 = vld [vmem:[%s0 + $0x28] sm:$0xf]
  %v38 = vld [vmem:[%s0 + $0x2c] sm:$0xf]
  %v39 = vld [vmem:[%s0 + $0x30] sm:$0xf]
  %v40 = vld [vmem:[%s0 + $0x34] sm:$0xf]
  %v41 = vld [vmem:[%s0 + $0x38] sm:$0xf]
  %v42 = vld [vmem:[%s0 + $0x3c] sm:$0xf]
  %v43 = vld [vmem:[%s1] sm:$0xff]
  %v44 = vld [vmem:[%s1 + $0x8] sm:$0xff]
  %v45 = vld [vmem:[%s1 + $0x10] sm:$0xff]
  %v46 = vld [vmem:[%s1 + $0x18] sm:$0xff]
  %v47 = vld [vmem:[%s1 + $0x20] sm:$0xff]
  %v48 = vld [vmem:[%s1 + $0x28] sm:$0xff]
  %v49 = vld [vmem:[%s1 + $0x30] sm:$0xff]
  %v50 = vld [vmem:[%s1 + $0x38] sm:$0xff]
  %v51 = vld [vmem:[%s1 + $0x40] sm:$0xff]
  %v52 = vld [vmem:[%s1 + $0x48] sm:$0xff]
  %v53 = vld [vmem:[%s1 + $0x50] sm:$0xff]
  %v54 = vld [vmem:[%s1 + $0x58] sm:$0xff]
  %v55 = vld [vmem:[%s1 + $0x60] sm:$0xff]
  %v56 = vld [vmem:[%s1 + $0x68] sm:$0xff]
  %v57 = vld [vmem:[%s1 + $0x70] sm:$0xff]
  %v58 = vld [vmem:[%s1 + $0x78] sm:$0xff]
  %v59 = vld [vmem:[%s1 + $0x80] sm:$0xff]
  %v60 = vld [vmem:[%s1 + $0x88] sm:$0xff]
  %v61 = vld [vmem:[%s1 + $0x90] sm:$0xff]
  %v62 = vld [vmem:[%s1 + $0x98] sm:$0xff]
  %v63 = vld [vmem:[%s1 + $0xa0] sm:$0xff]
  %v64 = vld [vmem:[%s1 + $0xa8] sm:$0xff]
  %v65 = vld [vmem:[%s1 + $0xb0] sm:$0xff]
  %v66 = vld [vmem:[%s1 + $0xb8] sm:$0xff]
  %v83 = vunpack.c.l.b16 %v27
  %v84 = vunpack.c.l.b16 %v28
  %v85 = vunpack.c.l.b16 %v29
  %v86 = vunpack.c.l.b16 %v30
  %v87 = vunpack.c.l.b16 %v31
  %v88 = vunpack.c.l.b16 %v32
  %v89 = vunpack.c.l.b16 %v33
  %v90 = vunpack.c.l.b16 %v34
  %v91 = vunpack.c.l.b16 %v35
  %v92 = vunpack.c.l.b16 %v36
  %v93 = vunpack.c.l.b16 %v37
  %v94 = vunpack.c.l.b16 %v38
  %v95 = vunpack.c.l.b16 %v39
  %v96 = vunpack.c.l.b16 %v40
  %v97 = vunpack.c.l.b16 %v41
  %v98 = vunpack.c.l.b16 %v42
  %v99 = vpack.c.b16 %v84, %v83
  %v100 = vpack.c.b16 %v86, %v85
  %v101 = vpack.c.b16 %v88, %v87
  %v102 = vpack.c.b16 %v90, %v89
  %v103 = vpack.c.b16 %v92, %v91
  %v104 = vpack.c.b16 %v94, %v93
  %v105 = vpack.c.b16 %v96, %v95
  %v106 = vpack.c.b16 %v98, %v97
  %v131 = vunpack.c.l.b16 %v43
  %v132 = vunpack.c.h.b16 %v43
  %v133 = vunpack.c.l.b16 %v44
  %v134 = vunpack.c.h.b16 %v44
  %v135 = vunpack.c.l.b16 %v45
  %v136 = vunpack.c.h.b16 %v45
  %v137 = vunpack.c.l.b16 %v46
  %v138 = vunpack.c.h.b16 %v46
  %v139 = vunpack.c.l.b16 %v47
  %v140 = vunpack.c.h.b16 %v47
  %v141 = vunpack.c.l.b16 %v48
  %v142 = vunpack.c.h.b16 %v48
  %v143 = vunpack.c.l.b16 %v49
  %v144 = vunpack.c.h.b16 %v49
  %v145 = vunpack.c.l.b16 %v50
  %v146 = vunpack.c.h.b16 %v50
  %v147 = vunpack.c.l.b16 %v51
  %v148 = vunpack.c.h.b16 %v51
  %v149 = vunpack.c.l.b16 %v52
  %v150 = vunpack.c.h.b16 %v52
  %v151 = vunpack.c.l.b16 %v53
  %v152 = vunpack.c.h.b16 %v53
  %v153 = vunpack.c.l.b16 %v54
  %v154 = vunpack.c.h.b16 %v54
  %v155 = vunpack.c.l.b16 %v55
  %v156 = vunpack.c.h.b16 %v55
  %v157 = vunpack.c.l.b16 %v56
  %v158 = vunpack.c.h.b16 %v56
  %v159 = vunpack.c.l.b16 %v57
  %v160 = vunpack.c.h.b16 %v57
  %v161 = vunpack.c.l.b16 %v58
  %v162 = vunpack.c.h.b16 %v58
  %v163 = vunpack.c.l.b16 %v59
  %v164 = vunpack.c.h.b16 %v59
  %v165 = vunpack.c.l.b16 %v60
  %v166 = vunpack.c.h.b16 %v60
  %v167 = vunpack.c.l.b16 %v61
  %v168 = vunpack.c.h.b16 %v61
  %v169 = vunpack.c.l.b16 %v62
  %v170 = vunpack.c.h.b16 %v62
  %v171 = vunpack.c.l.b16 %v63
  %v172 = vunpack.c.h.b16 %v63
  %v173 = vunpack.c.l.b16 %v64
  %v174 = vunpack.c.h.b16 %v64
  %v175 = vunpack.c.l.b16 %v65
  %v176 = vunpack.c.h.b16 %v65
  %v177 = vunpack.c.l.b16 %v66
  %v178 = vunpack.c.h.b16 %v66
  %v179 = vpack.c.b16 %v143, %v131
  %v180 = vpack.c.b16 %v144, %v132
  %v181 = vpack.c.b16 %v145, %v133
  %v182 = vpack.c.b16 %v146, %v134
  %v183 = vpack.c.b16 %v147, %v135
  %v184 = vpack.c.b16 %v148, %v136
  %v185 = vpack.c.b16 %v149, %v137
  %v186 = vpack.c.b16 %v150, %v138
  %v187 = vpack.c.b16 %v151, %v139
  %v188 = vpack.c.b16 %v152, %v140
  %v189 = vpack.c.b16 %v153, %v141
  %v190 = vpack.c.b16 %v154, %v142
  %v191 = vpack.c.b16 %v167, %v155
  %v192 = vpack.c.b16 %v168, %v156
  %v193 = vpack.c.b16 %v169, %v157
  %v194 = vpack.c.b16 %v170, %v158
  %v195 = vpack.c.b16 %v171, %v159
  %v196 = vpack.c.b16 %v172, %v160
  %v197 = vpack.c.b16 %v173, %v161
  %v198 = vpack.c.b16 %v174, %v162
  %v199 = vpack.c.b16 %v175, %v163
  %v200 = vpack.c.b16 %v176, %v164
  %v201 = vpack.c.b16 %v177, %v165
  %v202 = vpack.c.b16 %v178, %v166
  %vm227 = vcmask 261120
  %v229 = vsel %vm227, %v99, 0
  %v232 = vsel %vm227, %v100, 0
  %v235 = vsel %vm227, %v101, 0
  %v238 = vsel %vm227, %v102, 0
  %v241 = vsel %vm227, %v103, 0
  %v244 = vsel %vm227, %v104, 0
  %v247 = vsel %vm227, %v105, 0
  %v250 = vsel %vm227, %v106, 0
  %252 = vmatprep.subr.bf16.mxu0 %v180
  %253 = vmatpush1.bf16.msra.mxu0 %v179
  %254 = vmatprep.subr.bf16.mxu0 %v192
  %255 = vmatpush1.bf16.msra.mxu0 %v191
  %256 = vmatprep.subr.bf16.mxu0 0
  %257 = vmatpush1.bf16.msra.mxu0 0
  %258 = vmatprep.subr.bf16.mxu0 0
  %259 = vmatpush1.bf16.msra.mxu0 0
  %260 = vmatprep.subr.bf16.mxu0 0
  %261 = vmatpush1.bf16.msra.mxu0 0
  %262 = vmatprep.subr.bf16.mxu0 0
  %263 = vmatpush1.bf16.msra.mxu0 0
  %264 = vmatprep.subr.bf16.mxu0 0
  %265 = vmatpush1.bf16.msra.mxu0 0
  %266 = vmatprep.subr.bf16.mxu0 0
  %267 = vmatpush1.bf16.msra.mxu0 0
  %268 = vmatprep.subr.bf16.mxu0 0
  %269 = vmatpush1.bf16.msra.mxu0 0
  %270 = vmatprep.subr.bf16.mxu0 0
  %271 = vmatpush1.bf16.msra.mxu0 0
  %272 = vmatprep.subr.bf16.mxu0 0
  %273 = vmatpush1.bf16.msra.mxu0 0
  %274 = vmatprep.subr.bf16.mxu0 0
  %275 = vmatpush1.bf16.msra.mxu0 0
  %276 = vmatprep.subr.bf16.mxu0 0
  %277 = vmatpush1.bf16.msra.mxu0 0
  %278 = vmatprep.subr.bf16.mxu0 0
  %279 = vmatpush1.bf16.msra.mxu0 0
  %280 = vmatprep.subr.bf16.mxu0 0
  %281 = vmatpush1.bf16.msra.mxu0 0
  %282 = vmatprep.subr.bf16.mxu0 0
  %283 = vmatpush1.bf16.msra.mxu0 0
  %284 = vmatprep.mubr.bf16.mxu0 0
  %285 = vmatmul.mubr.bf16.gmra.mrb[0].mxu0 %v229
  %v286 = vpop.f32.mrb[0].mxu0
  %v287 = vadd.f32 0.0, %v286
  %v288 = vpop.f32.mrb[0].mxu0
  %v289 = vadd.f32 0.0, %v288
  %v290 = vpop.f32.mrb[0].mxu0
  %v291 = vadd.f32 0.0, %v290
  %v292 = vpop.f32.mrb[0].mxu0
  %v293 = vadd.f32 0.0, %v292
  %294 = vmatprep.mubr.bf16.mxu0 0
  %295 = vmatmul.mubr.bf16.gmra.mrb[0].mxu0 %v232
  %v296 = vpop.f32.mrb[0].mxu0
  %v297 = vadd.f32 0.0, %v296
  %v298 = vpop.f32.mrb[0].mxu0
  %v299 = vadd.f32 0.0, %v298
  %v300 = vpop.f32.mrb[0].mxu0
  %v301 = vadd.f32 0.0, %v300
  %v302 = vpop.f32.mrb[0].mxu0
  %v303 = vadd.f32 0.0, %v302
  %304 = vmatprep.mubr.bf16.mxu0 0
  %305 = vmatmul.mubr.bf16.gmra.mrb[0].mxu0 %v235
  %v306 = vpop.f32.mrb[0].mxu0
  %v307 = vadd.f32 0.0, %v306
  %v308 = vpop.f32.mrb[0].mxu0
  %v309 = vadd.f32 0.0, %v308
  %v310 = vpop.f32.mrb[0].mxu0
  %v311 = vadd.f32 0.0, %v310
  %v312 = vpop.f32.mrb[0].mxu0
  %v313 = vadd.f32 0.0, %v312
  %314 = vmatprep.mubr.bf16.mxu0 0
  %315 = vmatmul.mubr.bf16.gmra.mrb[0].mxu0 %v238
  %v316 = vpop.f32.mrb[0].mxu0
  %v317 = vadd.f32 0.0, %v316
  %v318 = vpop.f32.mrb[0].mxu0
  %v319 = vadd.f32 0.0, %v318
  %v320 = vpop.f32.mrb[0].mxu0
  %v321 = vadd.f32 0.0, %v320
  %v322 = vpop.f32.mrb[0].mxu0
  %v323 = vadd.f32 0.0, %v322
  %324 = vmatprep.mubr.bf16.mxu0 0
  %325 = vmatmul.mubr.bf16.gmra.mrb[0].mxu0 %v241
  %v326 = vpop.f32.mrb[0].mxu0
  %v327 = vadd.f32 0.0, %v326
  %v328 = vpop.f32.mrb[0].mxu0
  %v329 = vadd.f32 0.0, %v328
  %v330 = vpop.f32.mrb[0].mxu0
  %v331 = vadd.f32 0.0, %v330
  %v332 = vpop.f32.mrb[0].mxu0
  %v333 = vadd.f32 0.0, %v332
  %334 = vmatprep.mubr.bf16.mxu0 0
  %335 = vmatmul.mubr.bf16.gmra.mrb[0].mxu0 %v244
  %v336 = vpop.f32.mrb[0].mxu0
  %v337 = vadd.f32 0.0, %v336
  %v338 = vpop.f32.mrb[0].mxu0
  %v339 = vadd.f32 0.0, %v338
  %v340 = vpop.f32.mrb[0].mxu0
  %v341 = vadd.f32 0.0, %v340
  %v342 = vpop.f32.mrb[0].mxu0
  %v343 = vadd.f32 0.0, %v342
  %344 = vmatprep.mubr.bf16.mxu0 0
  %345 = vmatmul.mubr.bf16.gmra.mrb[0].mxu0 %v247
  %v346 = vpop.f32.mrb[0].mxu0
  %v347 = vadd.f32 0.0, %v346
  %v348 = vpop.f32.mrb[0].mxu0
  %v349 = vadd.f32 0.0, %v348
  %v350 = vpop.f32.mrb[0].mxu0
  %v351 = vadd.f32 0.0, %v350
  %v352 = vpop.f32.mrb[0].mxu0
  %v353 = vadd.f32 0.0, %v352
  %354 = vmatprep.mubr.bf16.mxu0 0
  %355 = vmatmul.mubr.bf16.gmra.mrb[0].mxu0 %v250
  %v356 = vpop.f32.mrb[0].mxu0
  %v357 = vadd.f32 0.0, %v356
  %v358 = vpop.f32.mrb[0].mxu0
  %v359 = vadd.f32 0.0, %v358
  %v360 = vpop.f32.mrb[0].mxu0
  %v361 = vadd.f32 0.0, %v360
  %v362 = vpop.f32.mrb[0].mxu0
  %v363 = vadd.f32 0.0, %v362
  %364 = vdwg.mxu0
  %365 = vmatprep.subr.bf16.mxu0 %v182
  %366 = vmatpush1.bf16.msra.mxu0 %v181
  %367 = vmatprep.subr.bf16.mxu0 %v194
  %368 = vmatpush1.bf16.msra.mxu0 %v193
  %369 = vmatprep.subr.bf16.mxu0 0
  %370 = vmatpush1.bf16.msra.mxu0 0
  %371 = vmatprep.subr.bf16.mxu0 0
  %372 = vmatpush1.bf16.msra.mxu0 0
  %373 = vmatprep.subr.bf16.mxu0 0
  %374 = vmatpush1.bf16.msra.mxu0 0
  %375 = vmatprep.subr.bf16.mxu0 0
  %376 = vmatpush1.bf16.msra.mxu0 0
  %377 = vmatprep.subr.bf16.mxu0 0
  %378 = vmatpush1.bf16.msra.mxu0 0
  %379 = vmatprep.subr.bf16.mxu0 0
  %380 = vmatpush1.bf16.msra.mxu0 0
  %381 = vmatprep.subr.bf16.mxu0 0
  %382 = vmatpush1.bf16.msra.mxu0 0
  %383 = vmatprep.subr.bf16.mxu0 0
  %384 = vmatpush1.bf16.msra.mxu0 0
  %385 = vmatprep.subr.bf16.mxu0 0
  %386 = vmatpush1.bf16.msra.mxu0 0
  %387 = vmatprep.subr.bf16.mxu0 0
  %388 = vmatpush1.bf16.msra.mxu0 0
  %389 = vmatprep.subr.bf16.mxu0 0
  %390 = vmatpush1.bf16.msra.mxu0 0
  %391 = vmatprep.subr.bf16.mxu0 0
  %392 = vmatpush1.bf16.msra.mxu0 0
  %393 = vmatprep.subr.bf16.mxu0 0
  %394 = vmatpush1.bf16.msra.mxu0 0
  %395 = vmatprep.subr.bf16.mxu0 0
  %396 = vmatpush1.bf16.msra.mxu0 0
  %397 = vmatprep.mubr.bf16.mxu0 0
  %398 = vmatmul.mubr.bf16.gmra.mrb[0].mxu0 %v229
  %v399 = vpop.f32.mrb[0].mxu0
  %v400 = vadd.f32 0.0, %v399
  %v401 = vpop.f32.mrb[0].mxu0
  %v402 = vadd.f32 0.0, %v401
  %v403 = vpop.f32.mrb[0].mxu0
  %v404 = vadd.f32 0.0, %v403
  %v405 = vpop.f32.mrb[0].mxu0
  %v406 = vadd.f32 0.0, %v405
  %407 = vmatprep.mubr.bf16.mxu0 0
  %408 = vmatmul.mubr.bf16.gmra.mrb[0].mxu0 %v232
  %v409 = vpop.f32.mrb[0].mxu0
  %v410 = vadd.f32 0.0, %v409
  %v411 = vpop.f32.mrb[0].mxu0
  %v412 = vadd.f32 0.0, %v411
  %v413 = vpop.f32.mrb[0].mxu0
  %v414 = vadd.f32 0.0, %v413
  %v415 = vpop.f32.mrb[0].mxu0
  %v416 = vadd.f32 0.0, %v415
  %417 = vmatprep.mubr.bf16.mxu0 0
  %418 = vmatmul.mubr.bf16.gmra.mrb[0].mxu0 %v235
  %v419 = vpop.f32.mrb[0].mxu0
  %v420 = vadd.f32 0.0, %v419
  %v421 = vpop.f32.mrb[0].mxu0
  %v422 = vadd.f32 0.0, %v421
  %v423 = vpop.f32.mrb[0].mxu0
  %v424 = vadd.f32 0.0, %v423
  %v425 = vpop.f32.mrb[0].mxu0
  %v426 = vadd.f32 0.0, %v425
  %427 = vmatprep.mubr.bf16.mxu0 0
  %428 = vmatmul.mubr.bf16.gmra.mrb[0].mxu0 %v238
  %v429 = vpop.f32.mrb[0].mxu0
  %v430 = vadd.f32 0.0, %v429
  %v431 = vpop.f32.mrb[0].mxu0
  %v432 = vadd.f32 0.0, %v431
  %v433 = vpop.f32.mrb[0].mxu0
  %v434 = vadd.f32 0.0, %v433
  %v435 = vpop.f32.mrb[0].mxu0
  %v436 = vadd.f32 0.0, %v435
  %437 = vmatprep.mubr.bf16.mxu0 0
  %438 = vmatmul.mubr.bf16.gmra.mrb[0].mxu0 %v241
  %v439 = vpop.f32.mrb[0].mxu0
  %v440 = vadd.f32 0.0, %v439
  %v441 = vpop.f32.mrb[0].mxu0
  %v442 = vadd.f32 0.0, %v441
  %v443 = vpop.f32.mrb[0].mxu0
  %v444 = vadd.f32 0.0, %v443
  %v445 = vpop.f32.mrb[0].mxu0
  %v446 = vadd.f32 0.0, %v445
  %447 = vmatprep.mubr.bf16.mxu0 0
  %448 = vmatmul.mubr.bf16.gmra.mrb[0].mxu0 %v244
  %v449 = vpop.f32.mrb[0].mxu0
  %v450 = vadd.f32 0.0, %v449
  %v451 = vpop.f32.mrb[0].mxu0
  %v452 = vadd.f32 0.0, %v451
  %v453 = vpop.f32.mrb[0].mxu0
  %v454 = vadd.f32 0.0, %v453
  %v455 = vpop.f32.mrb[0].mxu0
  %v456 = vadd.f32 0.0, %v455
  %457 = vmatprep.mubr.bf16.mxu0 0
  %458 = vmatmul.mubr.bf16.gmra.mrb[0].mxu0 %v247
  %v459 = vpop.f32.mrb[0].mxu0
  %v460 = vadd.f32 0.0, %v459
  %v461 = vpop.f32.mrb[0].mxu0
  %v462 = vadd.f32 0.0, %v461
  %v463 = vpop.f32.mrb[0].mxu0
  %v464 = vadd.f32 0.0, %v463
  %v465 = vpop.f32.mrb[0].mxu0
  %v466 = vadd.f32 0.0, %v465
  %467 = vmatprep.mubr.bf16.mxu0 0
  %468 = vmatmul.mubr.bf16.gmra.mrb[0].mxu0 %v250
  %v469 = vpop.f32.mrb[0].mxu0
  %v470 = vadd.f32 0.0, %v469
  %v471 = vpop.f32.mrb[0].mxu0
  %v472 = vadd.f32 0.0, %v471
  %v473 = vpop.f32.mrb[0].mxu0
  %v474 = vadd.f32 0.0, %v473
  %v475 = vpop.f32.mrb[0].mxu0
  %v476 = vadd.f32 0.0, %v475
  %477 = vdwg.mxu0
  %478 = vmatprep.subr.bf16.mxu0 %v184
  %479 = vmatpush1.bf16.msra.mxu0 %v183
  %480 = vmatprep.subr.bf16.mxu0 %v196
  %481 = vmatpush1.bf16.msra.mxu0 %v195
  %482 = vmatprep.subr.bf16.mxu0 0
  %483 = vmatpush1.bf16.msra.mxu0 0
  %484 = vmatprep.subr.bf16.mxu0 0
  %485 = vmatpush1.bf16.msra.mxu0 0
  %486 = vmatprep.subr.bf16.mxu0 0
  %487 = vmatpush1.bf16.msra.mxu0 0
  %488 = vmatprep.subr.bf16.mxu0 0
  %489 = vmatpush1.bf16.msra.mxu0 0
  %490 = vmatprep.subr.bf16.mxu0 0
  %491 = vmatpush1.bf16.msra.mxu0 0
  %492 = vmatprep.subr.bf16.mxu0 0
  %493 = vmatpush1.bf16.msra.mxu0 0
  %494 = vmatprep.subr.bf16.mxu0 0
  %495 = vmatpush1.bf16.msra.mxu0 0
  %496 = vmatprep.subr.bf16.mxu0 0
  %497 = vmatpush1.bf16.msra.mxu0 0
  %498 = vmatprep.subr.bf16.mxu0 0
  %499 = vmatpush1.bf16.msra.mxu0 0
  %500 = vmatprep.subr.bf16.mxu0 0
  %501 = vmatpush1.bf16.msra.mxu0 0
  %502 = vmatprep.subr.bf16.mxu0 0
  %503 = vmatpush1.bf16.msra.mxu0 0
  %504 = vmatprep.subr.bf16.mxu0 0
  %505 = vmatpush1.bf16.msra.mxu0 0
  %506 = vmatprep.subr.bf16.mxu0 0
  %507 = vmatpush1.bf16.msra.mxu0 0
  %508 = vmatprep.subr.bf16.mxu0 0
  %509 = vmatpush1.bf16.msra.mxu0 0
  %510 = vmatprep.mubr.bf16.mxu0 0
  %511 = vmatmul.mubr.bf16.gmra.mrb[0].mxu0 %v229
  %v512 = vpop.f32.mrb[0].mxu0
  %v513 = vadd.f32 0.0, %v512
  %v514 = vpop.f32.mrb[0].mxu0
  %v515 = vadd.f32 0.0, %v514
  %v516 = vpop.f32.mrb[0].mxu0
  %v517 = vadd.f32 0.0, %v516
  %v518 = vpop.f32.mrb[0].mxu0
  %v519 = vadd.f32 0.0, %v518
  %520 = vmatprep.mubr.bf16.mxu0 0
  %521 = vmatmul.mubr.bf16.gmra.mrb[0].mxu0 %v232
  %v522 = vpop.f32.mrb[0].mxu0
  %v523 = vadd.f32 0.0, %v522
  %v524 = vpop.f32.mrb[0].mxu0
  %v525 = vadd.f32 0.0, %v524
  %v526 = vpop.f32.mrb[0].mxu0
  %v527 = vadd.f32 0.0, %v526
  %v528 = vpop.f32.mrb[0].mxu0
  %v529 = vadd.f32 0.0, %v528
  %530 = vmatprep.mubr.bf16.mxu0 0
  %531 = vmatmul.mubr.bf16.gmra.mrb[0].mxu0 %v235
  %v532 = vpop.f32.mrb[0].mxu0
  %v533 = vadd.f32 0.0, %v532
  %v534 = vpop.f32.mrb[0].mxu0
  %v535 = vadd.f32 0.0, %v534
  %v536 = vpop.f32.mrb[0].mxu0
  %v537 = vadd.f32 0.0, %v536
  %v538 = vpop.f32.mrb[0].mxu0
  %v539 = vadd.f32 0.0, %v538
  %540 = vmatprep.mubr.bf16.mxu0 0
  %541 = vmatmul.mubr.bf16.gmra.mrb[0].mxu0 %v238
  %v542 = vpop.f32.mrb[0].mxu0
  %v543 = vadd.f32 0.0, %v542
  %v544 = vpop.f32.mrb[0].mxu0
  %v545 = vadd.f32 0.0, %v544
  %v546 = vpop.f32.mrb[0].mxu0
  %v547 = vadd.f32 0.0, %v546
  %v548 = vpop.f32.mrb[0].mxu0
  %v549 = vadd.f32 0.0, %v548
  %550 = vmatprep.mubr.bf16.mxu0 0
  %551 = vmatmul.mubr.bf16.gmra.mrb[0].mxu0 %v241
  %v552 = vpop.f32.mrb[0].mxu0
  %v553 = vadd.f32 0.0, %v552
  %v554 = vpop.f32.mrb[0].mxu0
  %v555 = vadd.f32 0.0, %v554
  %v556 = vpop.f32.mrb[0].mxu0
  %v557 = vadd.f32 0.0, %v556
  %v558 = vpop.f32.mrb[0].mxu0
  %v559 = vadd.f32 0.0, %v558
  %560 = vmatprep.mubr.bf16.mxu0 0
  %561 = vmatmul.mubr.bf16.gmra.mrb[0].mxu0 %v244
  %v562 = vpop.f32.mrb[0].mxu0
  %v563 = vadd.f32 0.0, %v562
  %v564 = vpop.f32.mrb[0].mxu0
  %v565 = vadd.f32 0.0, %v564
  %v566 = vpop.f32.mrb[0].mxu0
  %v567 = vadd.f32 0.0, %v566
  %v568 = vpop.f32.mrb[0].mxu0
  %v569 = vadd.f32 0.0, %v568
  %570 = vmatprep.mubr.bf16.mxu0 0
  %571 = vmatmul.mubr.bf16.gmra.mrb[0].mxu0 %v247
  %v572 = vpop.f32.mrb[0].mxu0
  %v573 = vadd.f32 0.0, %v572
  %v574 = vpop.f32.mrb[0].mxu0
  %v575 = vadd.f32 0.0, %v574
  %v576 = vpop.f32.mrb[0].mxu0
  %v577 = vadd.f32 0.0, %v576
  %v578 = vpop.f32.mrb[0].mxu0
  %v579 = vadd.f32 0.0, %v578
  %580 = vmatprep.mubr.bf16.mxu0 0
  %581 = vmatmul.mubr.bf16.gmra.mrb[0].mxu0 %v250
  %v582 = vpop.f32.mrb[0].mxu0
  %v583 = vadd.f32 0.0, %v582
  %v584 = vpop.f32.mrb[0].mxu0
  %v585 = vadd.f32 0.0, %v584
  %v586 = vpop.f32.mrb[0].mxu0
  %v587 = vadd.f32 0.0, %v586
  %v588 = vpop.f32.mrb[0].mxu0
  %v589 = vadd.f32 0.0, %v588
  %590 = vdwg.mxu0
  %591 = vmatprep.subr.bf16.mxu0 %v186
  %592 = vmatpush1.bf16.msra.mxu0 %v185
  %593 = vmatprep.subr.bf16.mxu0 %v198
  %594 = vmatpush1.bf16.msra.mxu0 %v197
  %595 = vmatprep.subr.bf16.mxu0 0
  %596 = vmatpush1.bf16.msra.mxu0 0
  %597 = vmatprep.subr.bf16.mxu0 0
  %598 = vmatpush1.bf16.msra.mxu0 0
  %599 = vmatprep.subr.bf16.mxu0 0
  %600 = vmatpush1.bf16.msra.mxu0 0
  %601 = vmatprep.subr.bf16.mxu0 0
  %602 = vmatpush1.bf16.msra.mxu0 0
  %603 = vmatprep.subr.bf16.mxu0 0
  %604 = vmatpush1.bf16.msra.mxu0 0
  %605 = vmatprep.subr.bf16.mxu0 0
  %606 = vmatpush1.bf16.msra.mxu0 0
  %607 = vmatprep.subr.bf16.mxu0 0
  %608 = vmatpush1.bf16.msra.mxu0 0
  %609 = vmatprep.subr.bf16.mxu0 0
  %610 = vmatpush1.bf16.msra.mxu0 0
  %611 = vmatprep.subr.bf16.mxu0 0
  %612 = vmatpush1.bf16.msra.mxu0 0
  %613 = vmatprep.subr.bf16.mxu0 0
  %614 = vmatpush1.bf16.msra.mxu0 0
  %615 = vmatprep.subr.bf16.mxu0 0
  %616 = vmatpush1.bf16.msra.mxu0 0
  %617 = vmatprep.subr.bf16.mxu0 0
  %618 = vmatpush1.bf16.msra.mxu0 0
  %619 = vmatprep.subr.bf16.mxu0 0
  %620 = vmatpush1.bf16.msra.mxu0 0
  %621 = vmatprep.subr.bf16.mxu0 0
  %622 = vmatpush1.bf16.msra.mxu0 0
  %623 = vmatprep.mubr.bf16.mxu0 0
  %624 = vmatmul.mubr.bf16.gmra.mrb[0].mxu0 %v229
  %v625 = vpop.f32.mrb[0].mxu0
  %v626 = vadd.f32 0.0, %v625
  %v627 = vpop.f32.mrb[0].mxu0
  %v628 = vadd.f32 0.0, %v627
  %v629 = vpop.f32.mrb[0].mxu0
  %v630 = vadd.f32 0.0, %v629
  %v631 = vpop.f32.mrb[0].mxu0
  %v632 = vadd.f32 0.0, %v631
  %633 = vmatprep.mubr.bf16.mxu0 0
  %634 = vmatmul.mubr.bf16.gmra.mrb[0].mxu0 %v232
  %v635 = vpop.f32.mrb[0].mxu0
  %v636 = vadd.f32 0.0, %v635
  %v637 = vpop.f32.mrb[0].mxu0
  %v638 = vadd.f32 0.0, %v637
  %v639 = vpop.f32.mrb[0].mxu0
  %v640 = vadd.f32 0.0, %v639
  %v641 = vpop.f32.mrb[0].mxu0
  %v642 = vadd.f32 0.0, %v641
  %643 = vmatprep.mubr.bf16.mxu0 0
  %644 = vmatmul.mubr.bf16.gmra.mrb[0].mxu0 %v235
  %v645 = vpop.f32.mrb[0].mxu0
  %v646 = vadd.f32 0.0, %v645
  %v647 = vpop.f32.mrb[0].mxu0
  %v648 = vadd.f32 0.0, %v647
  %v649 = vpop.f32.mrb[0].mxu0
  %v650 = vadd.f32 0.0, %v649
  %v651 = vpop.f32.mrb[0].mxu0
  %v652 = vadd.f32 0.0, %v651
  %653 = vmatprep.mubr.bf16.mxu0 0
  %654 = vmatmul.mubr.bf16.gmra.mrb[0].mxu0 %v238
  %v655 = vpop.f32.mrb[0].mxu0
  %v656 = vadd.f32 0.0, %v655
  %v657 = vpop.f32.mrb[0].mxu0
  %v658 = vadd.f32 0.0, %v657
  %v659 = vpop.f32.mrb[0].mxu0
  %v660 = vadd.f32 0.0, %v659
  %v661 = vpop.f32.mrb[0].mxu0
  %v662 = vadd.f32 0.0, %v661
  %663 = vmatprep.mubr.bf16.mxu0 0
  %664 = vmatmul.mubr.bf16.gmra.mrb[0].mxu0 %v241
  %v665 = vpop.f32.mrb[0].mxu0
  %v666 = vadd.f32 0.0, %v665
  %v667 = vpop.f32.mrb[0].mxu0
  %v668 = vadd.f32 0.0, %v667
  %v669 = vpop.f32.mrb[0].mxu0
  %v670 = vadd.f32 0.0, %v669
  %v671 = vpop.f32.mrb[0].mxu0
  %v672 = vadd.f32 0.0, %v671
  %673 = vmatprep.mubr.bf16.mxu0 0
  %674 = vmatmul.mubr.bf16.gmra.mrb[0].mxu0 %v244
  %v675 = vpop.f32.mrb[0].mxu0
  %v676 = vadd.f32 0.0, %v675
  %v677 = vpop.f32.mrb[0].mxu0
  %v678 = vadd.f32 0.0, %v677
  %v679 = vpop.f32.mrb[0].mxu0
  %v680 = vadd.f32 0.0, %v679
  %v681 = vpop.f32.mrb[0].mxu0
  %v682 = vadd.f32 0.0, %v681
  %683 = vmatprep.mubr.bf16.mxu0 0
  %684 = vmatmul.mubr.bf16.gmra.mrb[0].mxu0 %v247
  %v685 = vpop.f32.mrb[0].mxu0
  %v686 = vadd.f32 0.0, %v685
  %v687 = vpop.f32.mrb[0].mxu0
  %v688 = vadd.f32 0.0, %v687
  %v689 = vpop.f32.mrb[0].mxu0
  %v690 = vadd.f32 0.0, %v689
  %v691 = vpop.f32.mrb[0].mxu0
  %v692 = vadd.f32 0.0, %v691
  %693 = vmatprep.mubr.bf16.mxu0 0
  %694 = vmatmul.mubr.bf16.gmra.mrb[0].mxu0 %v250
  %v695 = vpop.f32.mrb[0].mxu0
  %v696 = vadd.f32 0.0, %v695
  %v697 = vpop.f32.mrb[0].mxu0
  %v698 = vadd.f32 0.0, %v697
  %v699 = vpop.f32.mrb[0].mxu0
  %v700 = vadd.f32 0.0, %v699
  %v701 = vpop.f32.mrb[0].mxu0
  %v702 = vadd.f32 0.0, %v701
  %703 = vdwg.mxu0
  %704 = vmatprep.subr.bf16.mxu0 %v188
  %705 = vmatpush1.bf16.msra.mxu0 %v187
  %706 = vmatprep.subr.bf16.mxu0 %v200
  %707 = vmatpush1.bf16.msra.mxu0 %v199
  %708 = vmatprep.subr.bf16.mxu0 0
  %709 = vmatpush1.bf16.msra.mxu0 0
  %710 = vmatprep.subr.bf16.mxu0 0
  %711 = vmatpush1.bf16.msra.mxu0 0
  %712 = vmatprep.subr.bf16.mxu0 0
  %713 = vmatpush1.bf16.msra.mxu0 0
  %714 = vmatprep.subr.bf16.mxu0 0
  %715 = vmatpush1.bf16.msra.mxu0 0
  %716 = vmatprep.subr.bf16.mxu0 0
  %717 = vmatpush1.bf16.msra.mxu0 0
  %718 = vmatprep.subr.bf16.mxu0 0
  %719 = vmatpush1.bf16.msra.mxu0 0
  %720 = vmatprep.subr.bf16.mxu0 0
  %721 = vmatpush1.bf16.msra.mxu0 0
  %722 = vmatprep.subr.bf16.mxu0 0
  %723 = vmatpush1.bf16.msra.mxu0 0
  %724 = vmatprep.subr.bf16.mxu0 0
  %725 = vmatpush1.bf16.msra.mxu0 0
  %726 = vmatprep.subr.bf16.mxu0 0
  %727 = vmatpush1.bf16.msra.mxu0 0
  %728 = vmatprep.subr.bf16.mxu0 0
  %729 = vmatpush1.bf16.msra.mxu0 0
  %730 = vmatprep.subr.bf16.mxu0 0
  %731 = vmatpush1.bf16.msra.mxu0 0
  %732 = vmatprep.subr.bf16.mxu0 0
  %733 = vmatpush1.bf16.msra.mxu0 0
  %734 = vmatprep.subr.bf16.mxu0 0
  %735 = vmatpush1.bf16.msra.mxu0 0
  %736 = vmatprep.mubr.bf16.mxu0 0
  %737 = vmatmul.mubr.bf16.gmra.mrb[0].mxu0 %v229
  %v738 = vpop.f32.mrb[0].mxu0
  %v739 = vadd.f32 0.0, %v738
  %v740 = vpop.f32.mrb[0].mxu0
  %v741 = vadd.f32 0.0, %v740
  %v742 = vpop.f32.mrb[0].mxu0
  %v743 = vadd.f32 0.0, %v742
  %v744 = vpop.f32.mrb[0].mxu0
  %v745 = vadd.f32 0.0, %v744
  %746 = vmatprep.mubr.bf16.mxu0 0
  %747 = vmatmul.mubr.bf16.gmra.mrb[0].mxu0 %v232
  %v748 = vpop.f32.mrb[0].mxu0
  %v749 = vadd.f32 0.0, %v748
  %v750 = vpop.f32.mrb[0].mxu0
  %v751 = vadd.f32 0.0, %v750
  %v752 = vpop.f32.mrb[0].mxu0
  %v753 = vadd.f32 0.0, %v752
  %v754 = vpop.f32.mrb[0].mxu0
  %v755 = vadd.f32 0.0, %v754
  %756 = vmatprep.mubr.bf16.mxu0 0
  %757 = vmatmul.mubr.bf16.gmra.mrb[0].mxu0 %v235
  %v758 = vpop.f32.mrb[0].mxu0
  %v759 = vadd.f32 0.0, %v758
  %v760 = vpop.f32.mrb[0].mxu0
  %v761 = vadd.f32 0.0, %v760
  %v762 = vpop.f32.mrb[0].mxu0
  %v763 = vadd.f32 0.0, %v762
  %v764 = vpop.f32.mrb[0].mxu0
  %v765 = vadd.f32 0.0, %v764
  %766 = vmatprep.mubr.bf16.mxu0 0
  %767 = vmatmul.mubr.bf16.gmra.mrb[0].mxu0 %v238
  %v768 = vpop.f32.mrb[0].mxu0
  %v769 = vadd.f32 0.0, %v768
  %v770 = vpop.f32.mrb[0].mxu0
  %v771 = vadd.f32 0.0, %v770
  %v772 = vpop.f32.mrb[0].mxu0
  %v773 = vadd.f32 0.0, %v772
  %v774 = vpop.f32.mrb[0].mxu0
  %v775 = vadd.f32 0.0, %v774
  %776 = vmatprep.mubr.bf16.mxu0 0
  %777 = vmatmul.mubr.bf16.gmra.mrb[0].mxu0 %v241
  %v778 = vpop.f32.mrb[0].mxu0
  %v779 = vadd.f32 0.0, %v778
  %v780 = vpop.f32.mrb[0].mxu0
  %v781 = vadd.f32 0.0, %v780
  %v782 = vpop.f32.mrb[0].mxu0
  %v783 = vadd.f32 0.0, %v782
  %v784 = vpop.f32.mrb[0].mxu0
  %v785 = vadd.f32 0.0, %v784
  %786 = vmatprep.mubr.bf16.mxu0 0
  %787 = vmatmul.mubr.bf16.gmra.mrb[0].mxu0 %v244
  %v788 = vpop.f32.mrb[0].mxu0
  %v789 = vadd.f32 0.0, %v788
  %v790 = vpop.f32.mrb[0].mxu0
  %v791 = vadd.f32 0.0, %v790
  %v792 = vpop.f32.mrb[0].mxu0
  %v793 = vadd.f32 0.0, %v792
  %v794 = vpop.f32.mrb[0].mxu0
  %v795 = vadd.f32 0.0, %v794
  %796 = vmatprep.mubr.bf16.mxu0 0
  %797 = vmatmul.mubr.bf16.gmra.mrb[0].mxu0 %v247
  %v798 = vpop.f32.mrb[0].mxu0
  %v799 = vadd.f32 0.0, %v798
  %v800 = vpop.f32.mrb[0].mxu0
  %v801 = vadd.f32 0.0, %v800
  %v802 = vpop.f32.mrb[0].mxu0
  %v803 = vadd.f32 0.0, %v802
  %v804 = vpop.f32.mrb[0].mxu0
  %v805 = vadd.f32 0.0, %v804
  %806 = vmatprep.mubr.bf16.mxu0 0
  %807 = vmatmul.mubr.bf16.gmra.mrb[0].mxu0 %v250
  %v808 = vpop.f32.mrb[0].mxu0
  %v809 = vadd.f32 0.0, %v808
  %v810 = vpop.f32.mrb[0].mxu0
  %v811 = vadd.f32 0.0, %v810
  %v812 = vpop.f32.mrb[0].mxu0
  %v813 = vadd.f32 0.0, %v812
  %v814 = vpop.f32.mrb[0].mxu0
  %v815 = vadd.f32 0.0, %v814
  %816 = vdwg.mxu0
  %817 = vmatprep.subr.bf16.mxu0 %v190
  %818 = vmatpush1.bf16.msra.mxu0 %v189
  %819 = vmatprep.subr.bf16.mxu0 %v202
  %820 = vmatpush1.bf16.msra.mxu0 %v201
  %821 = vmatprep.subr.bf16.mxu0 0
  %822 = vmatpush1.bf16.msra.mxu0 0
  %823 = vmatprep.subr.bf16.mxu0 0
  %824 = vmatpush1.bf16.msra.mxu0 0
  %825 = vmatprep.subr.bf16.mxu0 0
  %826 = vmatpush1.bf16.msra.mxu0 0
  %827 = vmatprep.subr.bf16.mxu0 0
  %828 = vmatpush1.bf16.msra.mxu0 0
  %829 = vmatprep.subr.bf16.mxu0 0
  %830 = vmatpush1.bf16.msra.mxu0 0
  %831 = vmatprep.subr.bf16.mxu0 0
  %832 = vmatpush1.bf16.msra.mxu0 0
  %833 = vmatprep.subr.bf16.mxu0 0
  %834 = vmatpush1.bf16.msra.mxu0 0
  %835 = vmatprep.subr.bf16.mxu0 0
  %836 = vmatpush1.bf16.msra.mxu0 0
  %837 = vmatprep.subr.bf16.mxu0 0
  %838 = vmatpush1.bf16.msra.mxu0 0
  %839 = vmatprep.subr.bf16.mxu0 0
  %840 = vmatpush1.bf16.msra.mxu0 0
  %841 = vmatprep.subr.bf16.mxu0 0
  %842 = vmatpush1.bf16.msra.mxu0 0
  %843 = vmatprep.subr.bf16.mxu0 0
  %844 = vmatpush1.bf16.msra.mxu0 0
  %845 = vmatprep.subr.bf16.mxu0 0
  %846 = vmatpush1.bf16.msra.mxu0 0
  %847 = vmatprep.subr.bf16.mxu0 0
  %848 = vmatpush1.bf16.msra.mxu0 0
  %849 = vmatprep.mubr.bf16.mxu0 0
  %850 = vmatmul.mubr.bf16.gmra.mrb[0].mxu0 %v229
  %v851 = vpop.f32.mrb[0].mxu0
  %v852 = vadd.f32 0.0, %v851
  %v853 = vpop.f32.mrb[0].mxu0
  %v854 = vadd.f32 0.0, %v853
  %v855 = vpop.f32.mrb[0].mxu0
  %v856 = vadd.f32 0.0, %v855
  %v857 = vpop.f32.mrb[0].mxu0
  %v858 = vadd.f32 0.0, %v857
  %859 = vmatprep.mubr.bf16.mxu0 0
  %860 = vmatmul.mubr.bf16.gmra.mrb[0].mxu0 %v232
  %v861 = vpop.f32.mrb[0].mxu0
  %v862 = vadd.f32 0.0, %v861
  %v863 = vpop.f32.mrb[0].mxu0
  %v864 = vadd.f32 0.0, %v863
  %v865 = vpop.f32.mrb[0].mxu0
  %v866 = vadd.f32 0.0, %v865
  %v867 = vpop.f32.mrb[0].mxu0
  %v868 = vadd.f32 0.0, %v867
  %869 = vmatprep.mubr.bf16.mxu0 0
  %870 = vmatmul.mubr.bf16.gmra.mrb[0].mxu0 %v235
  %v871 = vpop.f32.mrb[0].mxu0
  %v872 = vadd.f32 0.0, %v871
  %v873 = vpop.f32.mrb[0].mxu0
  %v874 = vadd.f32 0.0, %v873
  %v875 = vpop.f32.mrb[0].mxu0
  %v876 = vadd.f32 0.0, %v875
  %v877 = vpop.f32.mrb[0].mxu0
  %v878 = vadd.f32 0.0, %v877
  %879 = vmatprep.mubr.bf16.mxu0 0
  %880 = vmatmul.mubr.bf16.gmra.mrb[0].mxu0 %v238
  %v881 = vpop.f32.mrb[0].mxu0
  %v882 = vadd.f32 0.0, %v881
  %v883 = vpop.f32.mrb[0].mxu0
  %v884 = vadd.f32 0.0, %v883
  %v885 = vpop.f32.mrb[0].mxu0
  %v886 = vadd.f32 0.0, %v885
  %v887 = vpop.f32.mrb[0].mxu0
  %v888 = vadd.f32 0.0, %v887
  %889 = vmatprep.mubr.bf16.mxu0 0
  %890 = vmatmul.mubr.bf16.gmra.mrb[0].mxu0 %v241
  %v891 = vpop.f32.mrb[0].mxu0
  %v892 = vadd.f32 0.0, %v891
  %v893 = vpop.f32.mrb[0].mxu0
  %v894 = vadd.f32 0.0, %v893
  %v895 = vpop.f32.mrb[0].mxu0
  %v896 = vadd.f32 0.0, %v895
  %v897 = vpop.f32.mrb[0].mxu0
  %v898 = vadd.f32 0.0, %v897
  %899 = vmatprep.mubr.bf16.mxu0 0
  %900 = vmatmul.mubr.bf16.gmra.mrb[0].mxu0 %v244
  %v901 = vpop.f32.mrb[0].mxu0
  %v902 = vadd.f32 0.0, %v901
  %v903 = vpop.f32.mrb[0].mxu0
  %v904 = vadd.f32 0.0, %v903
  %v905 = vpop.f32.mrb[0].mxu0
  %v906 = vadd.f32 0.0, %v905
  %v907 = vpop.f32.mrb[0].mxu0
  %v908 = vadd.f32 0.0, %v907
  %909 = vmatprep.mubr.bf16.mxu0 0
  %910 = vmatmul.mubr.bf16.gmra.mrb[0].mxu0 %v247
  %v911 = vpop.f32.mrb[0].mxu0
  %v912 = vadd.f32 0.0, %v911
  %v913 = vpop.f32.mrb[0].mxu0
  %v914 = vadd.f32 0.0, %v913
  %v915 = vpop.f32.mrb[0].mxu0
  %v916 = vadd.f32 0.0, %v915
  %v917 = vpop.f32.mrb[0].mxu0
  %v918 = vadd.f32 0.0, %v917
  %919 = vmatprep.mubr.bf16.mxu0 0
  %920 = vmatmul.mubr.bf16.gmra.mrb[0].mxu0 %v250
  %v921 = vpop.f32.mrb[0].mxu0
  %v922 = vadd.f32 0.0, %v921
  %v923 = vpop.f32.mrb[0].mxu0
  %v924 = vadd.f32 0.0, %v923
  %v925 = vpop.f32.mrb[0].mxu0
  %v926 = vadd.f32 0.0, %v925
  %v927 = vpop.f32.mrb[0].mxu0
  %v928 = vadd.f32 0.0, %v927
  %929 = vdwg.mxu0
  %v930 = vlaneseq
  %v931 = vshrl.u32 %v930, 7
  %v932 = vadd.s32 %v931, 8
  %v933 = vrot.slane %v289, 1
  %v934 = vrot.slane %v299, 1
  %v935 = vrot.slane %v309, 1
  %v936 = vrot.slane %v319, 1
  %v937 = vrot.slane %v329, 1
  %v938 = vrot.slane %v339, 1
  %v939 = vrot.slane %v349, 1
  %v940 = vrot.slane %v359, 1
  %v941 = vrot.slane %v293, 1
  %v942 = vrot.slane %v303, 1
  %v943 = vrot.slane %v313, 1
  %v944 = vrot.slane %v323, 1
  %v945 = vrot.slane %v333, 1
  %v946 = vrot.slane %v343, 1
  %v947 = vrot.slane %v353, 1
  %v948 = vrot.slane %v363, 1
  %vm949 = vcmp.lt.s32.totalorder %v931, 7
  %v950 = vsel %vm949, %v933, %v941
  %v951 = vsel %vm949, %v934, %v942
  %v952 = vsel %vm949, %v935, %v943
  %v953 = vsel %vm949, %v936, %v944
  %v954 = vsel %vm949, %v937, %v945
  %v955 = vsel %vm949, %v938, %v946
  %v956 = vsel %vm949, %v939, %v947
  %v957 = vsel %vm949, %v940, %v948
  %v958 = vsel %vm949, %v941, %v933
  %v959 = vsel %vm949, %v942, %v934
  %v960 = vsel %vm949, %v943, %v935
  %v961 = vsel %vm949, %v944, %v936
  %v962 = vsel %vm949, %v945, %v937
  %v963 = vsel %vm949, %v946, %v938
  %v964 = vsel %vm949, %v947, %v939
  %v965 = vsel %vm949, %v948, %v940
  %v966 = vadd.f32 %v287, %v950
  %v967 = vadd.f32 %v291, %v958
  %v968 = vadd.f32 %v297, %v951
  %v969 = vadd.f32 %v301, %v959
  %v970 = vadd.f32 %v307, %v952
  %v971 = vadd.f32 %v311, %v960
  %v972 = vadd.f32 %v317, %v953
  %v973 = vadd.f32 %v321, %v961
  %v974 = vadd.f32 %v327, %v954
  %v975 = vadd.f32 %v331, %v962
  %v976 = vadd.f32 %v337, %v955
  %v977 = vadd.f32 %v341, %v963
  %v978 = vadd.f32 %v347, %v956
  %v979 = vadd.f32 %v351, %v964
  %v980 = vadd.f32 %v357, %v957
  %v981 = vadd.f32 %v361, %v965
  %v982 = vrot.slane %v400, 2
  %v983 = vrot.slane %v410, 2
  %v984 = vrot.slane %v420, 2
  %v985 = vrot.slane %v430, 2
  %v986 = vrot.slane %v440, 2
  %v987 = vrot.slane %v450, 2
  %v988 = vrot.slane %v460, 2
  %v989 = vrot.slane %v470, 2
  %v990 = vrot.slane %v404, 2
  %v991 = vrot.slane %v414, 2
  %v992 = vrot.slane %v424, 2
  %v993 = vrot.slane %v434, 2
  %v994 = vrot.slane %v444, 2
  %v995 = vrot.slane %v454, 2
  %v996 = vrot.slane %v464, 2
  %v997 = vrot.slane %v474, 2
  %vm998 = vcmp.lt.s32.totalorder %v931, 6
  %v999 = vsel %vm998, %v982, %v990
  %v1000 = vsel %vm998, %v983, %v991
  %v1001 = vsel %vm998, %v984, %v992
  %v1002 = vsel %vm998, %v985, %v993
  %v1003 = vsel %vm998, %v986, %v994
  %v1004 = vsel %vm998, %v987, %v995
  %v1005 = vsel %vm998, %v988, %v996
  %v1006 = vsel %vm998, %v989, %v997
  %v1007 = vsel %vm998, %v990, %v982
  %v1008 = vsel %vm998, %v991, %v983
  %v1009 = vsel %vm998, %v992, %v984
  %v1010 = vsel %vm998, %v993, %v985
  %v1011 = vsel %vm998, %v994, %v986
  %v1012 = vsel %vm998, %v995, %v987
  %v1013 = vsel %vm998, %v996, %v988
  %v1014 = vsel %vm998, %v997, %v989
  %v1015 = vadd.f32 %v966, %v999
  %v1016 = vadd.f32 %v967, %v1007
  %v1017 = vadd.f32 %v968, %v1000
  %v1018 = vadd.f32 %v969, %v1008
  %v1019 = vadd.f32 %v970, %v1001
  %v1020 = vadd.f32 %v971, %v1009
  %v1021 = vadd.f32 %v972, %v1002
  %v1022 = vadd.f32 %v973, %v1010
  %v1023 = vadd.f32 %v974, %v1003
  %v1024 = vadd.f32 %v975, %v1011
  %v1025 = vadd.f32 %v976, %v1004
  %v1026 = vadd.f32 %v977, %v1012
  %v1027 = vadd.f32 %v978, %v1005
  %v1028 = vadd.f32 %v979, %v1013
  %v1029 = vadd.f32 %v980, %v1006
  %v1030 = vadd.f32 %v981, %v1014
  %v1031 = vld [vmem:[%s2] sm:$0x1]
  %v1033 = vlaneseq
  %v1034 = vshrl.u32 %v1033, 7
  %v1035 = vsub.s32 0, %v1034
  %v1036 = vrot.slane %v1031, %v1035
  %v1038 = vadd.f32 %v1015, %v1036
  %v1039 = vadd.f32 %v1016, %v1036
  %v1040 = vadd.f32 %v1017, %v1036
  %v1041 = vadd.f32 %v1018, %v1036
  %v1042 = vadd.f32 %v1019, %v1036
  %v1043 = vadd.f32 %v1020, %v1036
  %v1044 = vadd.f32 %v1021, %v1036
  %v1045 = vadd.f32 %v1022, %v1036
  %v1046 = vadd.f32 %v1023, %v1036
  %v1047 = vadd.f32 %v1024, %v1036
  %v1048 = vadd.f32 %v1025, %v1036
  %v1049 = vadd.f32 %v1026, %v1036
  %v1050 = vadd.f32 %v1027, %v1036
  %v1051 = vadd.f32 %v1028, %v1036
  %v1052 = vadd.f32 %v1029, %v1036
  %v1053 = vadd.f32 %v1030, %v1036
  %vm1054 = vcmp.lt.s32.totalorder %v931, 14
  %vm1055 = vcmp.lt.s32.totalorder %v932, 14
  %v1056 = vsel %vm1054, 1, 0
  %v1057 = vsel %vm1055, 1, 0
  %v1058 = vcvt.s32.f32 %v1056
  %v1059 = vcvt.s32.f32 %v1057
  %v1060 = vtanh.pop %v1038
  %v1061 = vtanh.pop %v1039
  %v1062 = vtanh.pop %v1040
  %v1063 = vtanh.pop %v1041
  %v1064 = vtanh.pop %v1042
  %v1065 = vtanh.pop %v1043
  %v1066 = vtanh.pop %v1044
  %v1067 = vtanh.pop %v1045
  %v1068 = vtanh.pop %v1046
  %v1069 = vtanh.pop %v1047
  %v1070 = vtanh.pop %v1048
  %v1071 = vtanh.pop %v1049
  %v1072 = vtanh.pop %v1050
  %v1073 = vtanh.pop %v1051
  %v1074 = vtanh.pop %v1052
  %v1075 = vtanh.pop %v1053
  %v1076 = vmul.f32 %v1060, %v1058
  %v1077 = vmul.f32 %v1061, %v1059
  %v1078 = vmul.f32 %v1062, %v1058
  %v1079 = vmul.f32 %v1063, %v1059
  %v1080 = vmul.f32 %v1064, %v1058
  %v1081 = vmul.f32 %v1065, %v1059
  %v1082 = vmul.f32 %v1066, %v1058
  %v1083 = vmul.f32 %v1067, %v1059
  %v1084 = vmul.f32 %v1068, %v1058
  %v1085 = vmul.f32 %v1069, %v1059
  %v1086 = vmul.f32 %v1070, %v1058
  %v1087 = vmul.f32 %v1071, %v1059
  %v1088 = vmul.f32 %v1072, %v1058
  %v1089 = vmul.f32 %v1073, %v1059
  %v1090 = vmul.f32 %v1074, %v1058
  %v1091 = vmul.f32 %v1075, %v1059
  %v1092 = vadd.f32 %v1076, %v1077
  %v1093 = vrot.slane %v1092, 4
  %v1094 = vadd.f32 %v1092, %v1093
  %v1095 = vrot.slane %v1094, 2
  %v1096 = vadd.f32 %v1094, %v1095
  %v1097 = vrot.slane %v1096, 1
  %v1098 = vadd.f32 %v1096, %v1097
  %v1099 = vadd.f32 %v1078, %v1079
  %v1100 = vrot.slane %v1099, 4
  %v1101 = vadd.f32 %v1099, %v1100
  %v1102 = vrot.slane %v1101, 2
  %v1103 = vadd.f32 %v1101, %v1102
  %v1104 = vrot.slane %v1103, 1
  %v1105 = vadd.f32 %v1103, %v1104
  %v1106 = vadd.f32 %v1080, %v1081
  %v1107 = vrot.slane %v1106, 4
  %v1108 = vadd.f32 %v1106, %v1107
  %v1109 = vrot.slane %v1108, 2
  %v1110 = vadd.f32 %v1108, %v1109
  %v1111 = vrot.slane %v1110, 1
  %v1112 = vadd.f32 %v1110, %v1111
  %v1113 = vadd.f32 %v1082, %v1083
  %v1114 = vrot.slane %v1113, 4
  %v1115 = vadd.f32 %v1113, %v1114
  %v1116 = vrot.slane %v1115, 2
  %v1117 = vadd.f32 %v1115, %v1116
  %v1118 = vrot.slane %v1117, 1
  %v1119 = vadd.f32 %v1117, %v1118
  %v1120 = vadd.f32 %v1084, %v1085
  %v1121 = vrot.slane %v1120, 4
  %v1122 = vadd.f32 %v1120, %v1121
  %v1123 = vrot.slane %v1122, 2
  %v1124 = vadd.f32 %v1122, %v1123
  %v1125 = vrot.slane %v1124, 1
  %v1126 = vadd.f32 %v1124, %v1125
  %v1127 = vadd.f32 %v1086, %v1087
  %v1128 = vrot.slane %v1127, 4
  %v1129 = vadd.f32 %v1127, %v1128
  %v1130 = vrot.slane %v1129, 2
  %v1131 = vadd.f32 %v1129, %v1130
  %v1132 = vrot.slane %v1131, 1
  %v1133 = vadd.f32 %v1131, %v1132
  %v1134 = vadd.f32 %v1088, %v1089
  %v1135 = vrot.slane %v1134, 4
  %v1136 = vadd.f32 %v1134, %v1135
  %v1137 = vrot.slane %v1136, 2
  %v1138 = vadd.f32 %v1136, %v1137
  %v1139 = vrot.slane %v1138, 1
  %v1140 = vadd.f32 %v1138, %v1139
  %v1141 = vadd.f32 %v1090, %v1091
  %v1142 = vrot.slane %v1141, 4
  %v1143 = vadd.f32 %v1141, %v1142
  %v1144 = vrot.slane %v1143, 2
  %v1145 = vadd.f32 %v1143, %v1144
  %v1146 = vrot.slane %v1145, 1
  %v1147 = vadd.f32 %v1145, %v1146
  %v1148 = vtanh.pop %v1098
  %v1149 = vtanh.pop %v1105
  %v1150 = vtanh.pop %v1112
  %v1151 = vtanh.pop %v1119
  %v1152 = vtanh.pop %v1126
  %v1153 = vtanh.pop %v1133
  %v1154 = vtanh.pop %v1140
  %v1155 = vtanh.pop %v1147
  %v1156 = vrot.slane %v513, 1
  %v1157 = vrot.slane %v523, 1
  %v1158 = vrot.slane %v533, 1
  %v1159 = vrot.slane %v543, 1
  %v1160 = vrot.slane %v553, 1
  %v1161 = vrot.slane %v563, 1
  %v1162 = vrot.slane %v573, 1
  %v1163 = vrot.slane %v583, 1
  %v1164 = vrot.slane %v517, 1
  %v1165 = vrot.slane %v527, 1
  %v1166 = vrot.slane %v537, 1
  %v1167 = vrot.slane %v547, 1
  %v1168 = vrot.slane %v557, 1
  %v1169 = vrot.slane %v567, 1
  %v1170 = vrot.slane %v577, 1
  %v1171 = vrot.slane %v587, 1
  %v1172 = vsel %vm949, %v1156, %v1164
  %v1173 = vsel %vm949, %v1157, %v1165
  %v1174 = vsel %vm949, %v1158, %v1166
  %v1175 = vsel %vm949, %v1159, %v1167
  %v1176 = vsel %vm949, %v1160, %v1168
  %v1177 = vsel %vm949, %v1161, %v1169
  %v1178 = vsel %vm949, %v1162, %v1170
  %v1179 = vsel %vm949, %v1163, %v1171
  %v1180 = vsel %vm949, %v1164, %v1156
  %v1181 = vsel %vm949, %v1165, %v1157
  %v1182 = vsel %vm949, %v1166, %v1158
  %v1183 = vsel %vm949, %v1167, %v1159
  %v1184 = vsel %vm949, %v1168, %v1160
  %v1185 = vsel %vm949, %v1169, %v1161
  %v1186 = vsel %vm949, %v1170, %v1162
  %v1187 = vsel %vm949, %v1171, %v1163
  %v1188 = vadd.f32 %v402, %v1172
  %v1189 = vadd.f32 %v406, %v1180
  %v1190 = vadd.f32 %v412, %v1173
  %v1191 = vadd.f32 %v416, %v1181
  %v1192 = vadd.f32 %v422, %v1174
  %v1193 = vadd.f32 %v426, %v1182
  %v1194 = vadd.f32 %v432, %v1175
  %v1195 = vadd.f32 %v436, %v1183
  %v1196 = vadd.f32 %v442, %v1176
  %v1197 = vadd.f32 %v446, %v1184
  %v1198 = vadd.f32 %v452, %v1177
  %v1199 = vadd.f32 %v456, %v1185
  %v1200 = vadd.f32 %v462, %v1178
  %v1201 = vadd.f32 %v466, %v1186
  %v1202 = vadd.f32 %v472, %v1179
  %v1203 = vadd.f32 %v476, %v1187
  %v1204 = vrot.slane %v515, 2
  %v1205 = vrot.slane %v525, 2
  %v1206 = vrot.slane %v535, 2
  %v1207 = vrot.slane %v545, 2
  %v1208 = vrot.slane %v555, 2
  %v1209 = vrot.slane %v565, 2
  %v1210 = vrot.slane %v575, 2
  %v1211 = vrot.slane %v585, 2
  %v1212 = vrot.slane %v519, 2
  %v1213 = vrot.slane %v529, 2
  %v1214 = vrot.slane %v539, 2
  %v1215 = vrot.slane %v549, 2
  %v1216 = vrot.slane %v559, 2
  %v1217 = vrot.slane %v569, 2
  %v1218 = vrot.slane %v579, 2
  %v1219 = vrot.slane %v589, 2
  %v1220 = vsel %vm998, %v1204, %v1212
  %v1221 = vsel %vm998, %v1205, %v1213
  %v1222 = vsel %vm998, %v1206, %v1214
  %v1223 = vsel %vm998, %v1207, %v1215
  %v1224 = vsel %vm998, %v1208, %v1216
  %v1225 = vsel %vm998, %v1209, %v1217
  %v1226 = vsel %vm998, %v1210, %v1218
  %v1227 = vsel %vm998, %v1211, %v1219
  %v1228 = vsel %vm998, %v1212, %v1204
  %v1229 = vsel %vm998, %v1213, %v1205
  %v1230 = vsel %vm998, %v1214, %v1206
  %v1231 = vsel %vm998, %v1215, %v1207
  %v1232 = vsel %vm998, %v1216, %v1208
  %v1233 = vsel %vm998, %v1217, %v1209
  %v1234 = vsel %vm998, %v1218, %v1210
  %v1235 = vsel %vm998, %v1219, %v1211
  %v1236 = vadd.f32 %v1188, %v1220
  %v1237 = vadd.f32 %v1189, %v1228
  %v1238 = vadd.f32 %v1190, %v1221
  %v1239 = vadd.f32 %v1191, %v1229
  %v1240 = vadd.f32 %v1192, %v1222
  %v1241 = vadd.f32 %v1193, %v1230
  %v1242 = vadd.f32 %v1194, %v1223
  %v1243 = vadd.f32 %v1195, %v1231
  %v1244 = vadd.f32 %v1196, %v1224
  %v1245 = vadd.f32 %v1197, %v1232
  %v1246 = vadd.f32 %v1198, %v1225
  %v1247 = vadd.f32 %v1199, %v1233
  %v1248 = vadd.f32 %v1200, %v1226
  %v1249 = vadd.f32 %v1201, %v1234
  %v1250 = vadd.f32 %v1202, %v1227
  %v1251 = vadd.f32 %v1203, %v1235
  %v1252 = vrot.slane %v626, 3
  %v1253 = vrot.slane %v636, 3
  %v1254 = vrot.slane %v646, 3
  %v1255 = vrot.slane %v656, 3
  %v1256 = vrot.slane %v666, 3
  %v1257 = vrot.slane %v676, 3
  %v1258 = vrot.slane %v686, 3
  %v1259 = vrot.slane %v696, 3
  %v1260 = vrot.slane %v630, 3
  %v1261 = vrot.slane %v640, 3
  %v1262 = vrot.slane %v650, 3
  %v1263 = vrot.slane %v660, 3
  %v1264 = vrot.slane %v670, 3
  %v1265 = vrot.slane %v680, 3
  %v1266 = vrot.slane %v690, 3
  %v1267 = vrot.slane %v700, 3
  %vm1268 = vcmp.lt.s32.totalorder %v931, 5
  %v1269 = vsel %vm1268, %v1252, %v1260
  %v1270 = vsel %vm1268, %v1253, %v1261
  %v1271 = vsel %vm1268, %v1254, %v1262
  %v1272 = vsel %vm1268, %v1255, %v1263
  %v1273 = vsel %vm1268, %v1256, %v1264
  %v1274 = vsel %vm1268, %v1257, %v1265
  %v1275 = vsel %vm1268, %v1258, %v1266
  %v1276 = vsel %vm1268, %v1259, %v1267
  %v1277 = vsel %vm1268, %v1260, %v1252
  %v1278 = vsel %vm1268, %v1261, %v1253
  %v1279 = vsel %vm1268, %v1262, %v1254
  %v1280 = vsel %vm1268, %v1263, %v1255
  %v1281 = vsel %vm1268, %v1264, %v1256
  %v1282 = vsel %vm1268, %v1265, %v1257
  %v1283 = vsel %vm1268, %v1266, %v1258
  %v1284 = vsel %vm1268, %v1267, %v1259
  %v1285 = vadd.f32 %v1236, %v1269
  %v1286 = vadd.f32 %v1237, %v1277
  %v1287 = vadd.f32 %v1238, %v1270
  %v1288 = vadd.f32 %v1239, %v1278
  %v1289 = vadd.f32 %v1240, %v1271
  %v1290 = vadd.f32 %v1241, %v1279
  %v1291 = vadd.f32 %v1242, %v1272
  %v1292 = vadd.f32 %v1243, %v1280
  %v1293 = vadd.f32 %v1244, %v1273
  %v1294 = vadd.f32 %v1245, %v1281
  %v1295 = vadd.f32 %v1246, %v1274
  %v1296 = vadd.f32 %v1247, %v1282
  %v1297 = vadd.f32 %v1248, %v1275
  %v1298 = vadd.f32 %v1249, %v1283
  %v1299 = vadd.f32 %v1250, %v1276
  %v1300 = vadd.f32 %v1251, %v1284
  %v1301 = vld [vmem:[%s3] sm:$0x1]
  %v1303 = vlaneseq
  %v1304 = vshrl.u32 %v1303, 7
  %v1305 = vsub.s32 0, %v1304
  %v1306 = vrot.slane %v1301, %v1305
  %v1308 = vadd.f32 %v1285, %v1306
  %v1309 = vadd.f32 %v1286, %v1306
  %v1310 = vadd.f32 %v1287, %v1306
  %v1311 = vadd.f32 %v1288, %v1306
  %v1312 = vadd.f32 %v1289, %v1306
  %v1313 = vadd.f32 %v1290, %v1306
  %v1314 = vadd.f32 %v1291, %v1306
  %v1315 = vadd.f32 %v1292, %v1306
  %v1316 = vadd.f32 %v1293, %v1306
  %v1317 = vadd.f32 %v1294, %v1306
  %v1318 = vadd.f32 %v1295, %v1306
  %v1319 = vadd.f32 %v1296, %v1306
  %v1320 = vadd.f32 %v1297, %v1306
  %v1321 = vadd.f32 %v1298, %v1306
  %v1322 = vadd.f32 %v1299, %v1306
  %v1323 = vadd.f32 %v1300, %v1306
  %vm1324 = vcmp.lt.s32.totalorder %v931, 13
  %vm1325 = vcmp.lt.s32.totalorder %v932, 13
  %v1326 = vsel %vm1324, 1, 0
  %v1327 = vsel %vm1325, 1, 0
  %v1328 = vcvt.s32.f32 %v1326
  %v1329 = vcvt.s32.f32 %v1327
  %v1330 = vtanh.pop %v1308
  %v1331 = vtanh.pop %v1309
  %v1332 = vtanh.pop %v1310
  %v1333 = vtanh.pop %v1311
  %v1334 = vtanh.pop %v1312
  %v1335 = vtanh.pop %v1313
  %v1336 = vtanh.pop %v1314
  %v1337 = vtanh.pop %v1315
  %v1338 = vtanh.pop %v1316
  %v1339 = vtanh.pop %v1317
  %v1340 = vtanh.pop %v1318
  %v1341 = vtanh.pop %v1319
  %v1342 = vtanh.pop %v1320
  %v1343 = vtanh.pop %v1321
  %v1344 = vtanh.pop %v1322
  %v1345 = vtanh.pop %v1323
  %v1346 = vmul.f32 %v1330, %v1328
  %v1347 = vmul.f32 %v1331, %v1329
  %v1348 = vmul.f32 %v1332, %v1328
  %v1349 = vmul.f32 %v1333, %v1329
  %v1350 = vmul.f32 %v1334, %v1328
  %v1351 = vmul.f32 %v1335, %v1329
  %v1352 = vmul.f32 %v1336, %v1328
  %v1353 = vmul.f32 %v1337, %v1329
  %v1354 = vmul.f32 %v1338, %v1328
  %v1355 = vmul.f32 %v1339, %v1329
  %v1356 = vmul.f32 %v1340, %v1328
  %v1357 = vmul.f32 %v1341, %v1329
  %v1358 = vmul.f32 %v1342, %v1328
  %v1359 = vmul.f32 %v1343, %v1329
  %v1360 = vmul.f32 %v1344, %v1328
  %v1361 = vmul.f32 %v1345, %v1329
  %v1362 = vadd.f32 %v1346, %v1347
  %v1363 = vrot.slane %v1362, 4
  %v1364 = vadd.f32 %v1362, %v1363
  %v1365 = vrot.slane %v1364, 2
  %v1366 = vadd.f32 %v1364, %v1365
  %v1367 = vrot.slane %v1366, 1
  %v1368 = vadd.f32 %v1366, %v1367
  %v1369 = vadd.f32 %v1348, %v1349
  %v1370 = vrot.slane %v1369, 4
  %v1371 = vadd.f32 %v1369, %v1370
  %v1372 = vrot.slane %v1371, 2
  %v1373 = vadd.f32 %v1371, %v1372
  %v1374 = vrot.slane %v1373, 1
  %v1375 = vadd.f32 %v1373, %v1374
  %v1376 = vadd.f32 %v1350, %v1351
  %v1377 = vrot.slane %v1376, 4
  %v1378 = vadd.f32 %v1376, %v1377
  %v1379 = vrot.slane %v1378, 2
  %v1380 = vadd.f32 %v1378, %v1379
  %v1381 = vrot.slane %v1380, 1
  %v1382 = vadd.f32 %v1380, %v1381
  %v1383 = vadd.f32 %v1352, %v1353
  %v1384 = vrot.slane %v1383, 4
  %v1385 = vadd.f32 %v1383, %v1384
  %v1386 = vrot.slane %v1385, 2
  %v1387 = vadd.f32 %v1385, %v1386
  %v1388 = vrot.slane %v1387, 1
  %v1389 = vadd.f32 %v1387, %v1388
  %v1390 = vadd.f32 %v1354, %v1355
  %v1391 = vrot.slane %v1390, 4
  %v1392 = vadd.f32 %v1390, %v1391
  %v1393 = vrot.slane %v1392, 2
  %v1394 = vadd.f32 %v1392, %v1393
  %v1395 = vrot.slane %v1394, 1
  %v1396 = vadd.f32 %v1394, %v1395
  %v1397 = vadd.f32 %v1356, %v1357
  %v1398 = vrot.slane %v1397, 4
  %v1399 = vadd.f32 %v1397, %v1398
  %v1400 = vrot.slane %v1399, 2
  %v1401 = vadd.f32 %v1399, %v1400
  %v1402 = vrot.slane %v1401, 1
  %v1403 = vadd.f32 %v1401, %v1402
  %v1404 = vadd.f32 %v1358, %v1359
  %v1405 = vrot.slane %v1404, 4
  %v1406 = vadd.f32 %v1404, %v1405
  %v1407 = vrot.slane %v1406, 2
  %v1408 = vadd.f32 %v1406, %v1407
  %v1409 = vrot.slane %v1408, 1
  %v1410 = vadd.f32 %v1408, %v1409
  %v1411 = vadd.f32 %v1360, %v1361
  %v1412 = vrot.slane %v1411, 4
  %v1413 = vadd.f32 %v1411, %v1412
  %v1414 = vrot.slane %v1413, 2
  %v1415 = vadd.f32 %v1413, %v1414
  %v1416 = vrot.slane %v1415, 1
  %v1417 = vadd.f32 %v1415, %v1416
  %v1418 = vtanh.pop %v1368
  %v1419 = vtanh.pop %v1375
  %v1420 = vtanh.pop %v1382
  %v1421 = vtanh.pop %v1389
  %v1422 = vtanh.pop %v1396
  %v1423 = vtanh.pop %v1403
  %v1424 = vtanh.pop %v1410
  %v1425 = vtanh.pop %v1417
  %v1426 = vrot.slane %v739, 1
  %v1427 = vrot.slane %v749, 1
  %v1428 = vrot.slane %v759, 1
  %v1429 = vrot.slane %v769, 1
  %v1430 = vrot.slane %v779, 1
  %v1431 = vrot.slane %v789, 1
  %v1432 = vrot.slane %v799, 1
  %v1433 = vrot.slane %v809, 1
  %v1434 = vrot.slane %v743, 1
  %v1435 = vrot.slane %v753, 1
  %v1436 = vrot.slane %v763, 1
  %v1437 = vrot.slane %v773, 1
  %v1438 = vrot.slane %v783, 1
  %v1439 = vrot.slane %v793, 1
  %v1440 = vrot.slane %v803, 1
  %v1441 = vrot.slane %v813, 1
  %v1442 = vsel %vm949, %v1426, %v1434
  %v1443 = vsel %vm949, %v1427, %v1435
  %v1444 = vsel %vm949, %v1428, %v1436
  %v1445 = vsel %vm949, %v1429, %v1437
  %v1446 = vsel %vm949, %v1430, %v1438
  %v1447 = vsel %vm949, %v1431, %v1439
  %v1448 = vsel %vm949, %v1432, %v1440
  %v1449 = vsel %vm949, %v1433, %v1441
  %v1450 = vsel %vm949, %v1434, %v1426
  %v1451 = vsel %vm949, %v1435, %v1427
  %v1452 = vsel %vm949, %v1436, %v1428
  %v1453 = vsel %vm949, %v1437, %v1429
  %v1454 = vsel %vm949, %v1438, %v1430
  %v1455 = vsel %vm949, %v1439, %v1431
  %v1456 = vsel %vm949, %v1440, %v1432
  %v1457 = vsel %vm949, %v1441, %v1433
  %v1458 = vadd.f32 %v628, %v1442
  %v1459 = vadd.f32 %v632, %v1450
  %v1460 = vadd.f32 %v638, %v1443
  %v1461 = vadd.f32 %v642, %v1451
  %v1462 = vadd.f32 %v648, %v1444
  %v1463 = vadd.f32 %v652, %v1452
  %v1464 = vadd.f32 %v658, %v1445
  %v1465 = vadd.f32 %v662, %v1453
  %v1466 = vadd.f32 %v668, %v1446
  %v1467 = vadd.f32 %v672, %v1454
  %v1468 = vadd.f32 %v678, %v1447
  %v1469 = vadd.f32 %v682, %v1455
  %v1470 = vadd.f32 %v688, %v1448
  %v1471 = vadd.f32 %v692, %v1456
  %v1472 = vadd.f32 %v698, %v1449
  %v1473 = vadd.f32 %v702, %v1457
  %v1474 = vrot.slane %v741, 2
  %v1475 = vrot.slane %v751, 2
  %v1476 = vrot.slane %v761, 2
  %v1477 = vrot.slane %v771, 2
  %v1478 = vrot.slane %v781, 2
  %v1479 = vrot.slane %v791, 2
  %v1480 = vrot.slane %v801, 2
  %v1481 = vrot.slane %v811, 2
  %v1482 = vrot.slane %v745, 2
  %v1483 = vrot.slane %v755, 2
  %v1484 = vrot.slane %v765, 2
  %v1485 = vrot.slane %v775, 2
  %v1486 = vrot.slane %v785, 2
  %v1487 = vrot.slane %v795, 2
  %v1488 = vrot.slane %v805, 2
  %v1489 = vrot.slane %v815, 2
  %v1490 = vsel %vm998, %v1474, %v1482
  %v1491 = vsel %vm998, %v1475, %v1483
  %v1492 = vsel %vm998, %v1476, %v1484
  %v1493 = vsel %vm998, %v1477, %v1485
  %v1494 = vsel %vm998, %v1478, %v1486
  %v1495 = vsel %vm998, %v1479, %v1487
  %v1496 = vsel %vm998, %v1480, %v1488
  %v1497 = vsel %vm998, %v1481, %v1489
  %v1498 = vsel %vm998, %v1482, %v1474
  %v1499 = vsel %vm998, %v1483, %v1475
  %v1500 = vsel %vm998, %v1484, %v1476
  %v1501 = vsel %vm998, %v1485, %v1477
  %v1502 = vsel %vm998, %v1486, %v1478
  %v1503 = vsel %vm998, %v1487, %v1479
  %v1504 = vsel %vm998, %v1488, %v1480
  %v1505 = vsel %vm998, %v1489, %v1481
  %v1506 = vadd.f32 %v1458, %v1490
  %v1507 = vadd.f32 %v1459, %v1498
  %v1508 = vadd.f32 %v1460, %v1491
  %v1509 = vadd.f32 %v1461, %v1499
  %v1510 = vadd.f32 %v1462, %v1492
  %v1511 = vadd.f32 %v1463, %v1500
  %v1512 = vadd.f32 %v1464, %v1493
  %v1513 = vadd.f32 %v1465, %v1501
  %v1514 = vadd.f32 %v1466, %v1494
  %v1515 = vadd.f32 %v1467, %v1502
  %v1516 = vadd.f32 %v1468, %v1495
  %v1517 = vadd.f32 %v1469, %v1503
  %v1518 = vadd.f32 %v1470, %v1496
  %v1519 = vadd.f32 %v1471, %v1504
  %v1520 = vadd.f32 %v1472, %v1497
  %v1521 = vadd.f32 %v1473, %v1505
  %v1522 = vrot.slane %v852, 3
  %v1523 = vrot.slane %v862, 3
  %v1524 = vrot.slane %v872, 3
  %v1525 = vrot.slane %v882, 3
  %v1526 = vrot.slane %v892, 3
  %v1527 = vrot.slane %v902, 3
  %v1528 = vrot.slane %v912, 3
  %v1529 = vrot.slane %v922, 3
  %v1530 = vrot.slane %v856, 3
  %v1531 = vrot.slane %v866, 3
  %v1532 = vrot.slane %v876, 3
  %v1533 = vrot.slane %v886, 3
  %v1534 = vrot.slane %v896, 3
  %v1535 = vrot.slane %v906, 3
  %v1536 = vrot.slane %v916, 3
  %v1537 = vrot.slane %v926, 3
  %v1538 = vsel %vm1268, %v1522, %v1530
  %v1539 = vsel %vm1268, %v1523, %v1531
  %v1540 = vsel %vm1268, %v1524, %v1532
  %v1541 = vsel %vm1268, %v1525, %v1533
  %v1542 = vsel %vm1268, %v1526, %v1534
  %v1543 = vsel %vm1268, %v1527, %v1535
  %v1544 = vsel %vm1268, %v1528, %v1536
  %v1545 = vsel %vm1268, %v1529, %v1537
  %v1546 = vsel %vm1268, %v1530, %v1522
  %v1547 = vsel %vm1268, %v1531, %v1523
  %v1548 = vsel %vm1268, %v1532, %v1524
  %v1549 = vsel %vm1268, %v1533, %v1525
  %v1550 = vsel %vm1268, %v1534, %v1526
  %v1551 = vsel %vm1268, %v1535, %v1527
  %v1552 = vsel %vm1268, %v1536, %v1528
  %v1553 = vsel %vm1268, %v1537, %v1529
  %v1554 = vadd.f32 %v1506, %v1538
  %v1555 = vadd.f32 %v1507, %v1546
  %v1556 = vadd.f32 %v1508, %v1539
  %v1557 = vadd.f32 %v1509, %v1547
  %v1558 = vadd.f32 %v1510, %v1540
  %v1559 = vadd.f32 %v1511, %v1548
  %v1560 = vadd.f32 %v1512, %v1541
  %v1561 = vadd.f32 %v1513, %v1549
  %v1562 = vadd.f32 %v1514, %v1542
  %v1563 = vadd.f32 %v1515, %v1550
  %v1564 = vadd.f32 %v1516, %v1543
  %v1565 = vadd.f32 %v1517, %v1551
  %v1566 = vadd.f32 %v1518, %v1544
  %v1567 = vadd.f32 %v1519, %v1552
  %v1568 = vadd.f32 %v1520, %v1545
  %v1569 = vadd.f32 %v1521, %v1553
  %v1570 = vrot.slane %v854, 4
  %v1571 = vrot.slane %v864, 4
  %v1572 = vrot.slane %v874, 4
  %v1573 = vrot.slane %v884, 4
  %v1574 = vrot.slane %v894, 4
  %v1575 = vrot.slane %v904, 4
  %v1576 = vrot.slane %v914, 4
  %v1577 = vrot.slane %v924, 4
  %v1578 = vrot.slane %v858, 4
  %v1579 = vrot.slane %v868, 4
  %v1580 = vrot.slane %v878, 4
  %v1581 = vrot.slane %v888, 4
  %v1582 = vrot.slane %v898, 4
  %v1583 = vrot.slane %v908, 4
  %v1584 = vrot.slane %v918, 4
  %v1585 = vrot.slane %v928, 4
  %vm1586 = vcmp.lt.s32.totalorder %v931, 4
  %v1587 = vsel %vm1586, %v1570, %v1578
  %v1588 = vsel %vm1586, %v1571, %v1579
  %v1589 = vsel %vm1586, %v1572, %v1580
  %v1590 = vsel %vm1586, %v1573, %v1581
  %v1591 = vsel %vm1586, %v1574, %v1582
  %v1592 = vsel %vm1586, %v1575, %v1583
  %v1593 = vsel %vm1586, %v1576, %v1584
  %v1594 = vsel %vm1586, %v1577, %v1585
  %v1595 = vsel %vm1586, %v1578, %v1570
  %v1596 = vsel %vm1586, %v1579, %v1571
  %v1597 = vsel %vm1586, %v1580, %v1572
  %v1598 = vsel %vm1586, %v1581, %v1573
  %v1599 = vsel %vm1586, %v1582, %v1574
  %v1600 = vsel %vm1586, %v1583, %v1575
  %v1601 = vsel %vm1586, %v1584, %v1576
  %v1602 = vsel %vm1586, %v1585, %v1577
  %v1603 = vadd.f32 %v1554, %v1587
  %v1604 = vadd.f32 %v1555, %v1595
  %v1605 = vadd.f32 %v1556, %v1588
  %v1606 = vadd.f32 %v1557, %v1596
  %v1607 = vadd.f32 %v1558, %v1589
  %v1608 = vadd.f32 %v1559, %v1597
  %v1609 = vadd.f32 %v1560, %v1590
  %v1610 = vadd.f32 %v1561, %v1598
  %v1611 = vadd.f32 %v1562, %v1591
  %v1612 = vadd.f32 %v1563, %v1599
  %v1613 = vadd.f32 %v1564, %v1592
  %v1614 = vadd.f32 %v1565, %v1600
  %v1615 = vadd.f32 %v1566, %v1593
  %v1616 = vadd.f32 %v1567, %v1601
  %v1617 = vadd.f32 %v1568, %v1594
  %v1618 = vadd.f32 %v1569, %v1602
  %v1619 = vld [vmem:[%s4] sm:$0x1]
  %v1621 = vlaneseq
  %v1622 = vshrl.u32 %v1621, 7
  %v1623 = vsub.s32 0, %v1622
  %v1624 = vrot.slane %v1619, %v1623
  %v1626 = vadd.f32 %v1603, %v1624
  %v1627 = vadd.f32 %v1604, %v1624
  %v1628 = vadd.f32 %v1605, %v1624
  %v1629 = vadd.f32 %v1606, %v1624
  %v1630 = vadd.f32 %v1607, %v1624
  %v1631 = vadd.f32 %v1608, %v1624
  %v1632 = vadd.f32 %v1609, %v1624
  %v1633 = vadd.f32 %v1610, %v1624
  %v1634 = vadd.f32 %v1611, %v1624
  %v1635 = vadd.f32 %v1612, %v1624
  %v1636 = vadd.f32 %v1613, %v1624
  %v1637 = vadd.f32 %v1614, %v1624
  %v1638 = vadd.f32 %v1615, %v1624
  %v1639 = vadd.f32 %v1616, %v1624
  %v1640 = vadd.f32 %v1617, %v1624
  %v1641 = vadd.f32 %v1618, %v1624
  %vm1642 = vcmp.lt.s32.totalorder %v931, 12
  %vm1643 = vcmp.lt.s32.totalorder %v932, 12
  %v1644 = vsel %vm1642, 1, 0
  %v1645 = vsel %vm1643, 1, 0
  %v1646 = vcvt.s32.f32 %v1644
  %v1647 = vcvt.s32.f32 %v1645
  %v1648 = vtanh.pop %v1626
  %v1649 = vtanh.pop %v1627
  %v1650 = vtanh.pop %v1628
  %v1651 = vtanh.pop %v1629
  %v1652 = vtanh.pop %v1630
  %v1653 = vtanh.pop %v1631
  %v1654 = vtanh.pop %v1632
  %v1655 = vtanh.pop %v1633
  %v1656 = vtanh.pop %v1634
  %v1657 = vtanh.pop %v1635
  %v1658 = vtanh.pop %v1636
  %v1659 = vtanh.pop %v1637
  %v1660 = vtanh.pop %v1638
  %v1661 = vtanh.pop %v1639
  %v1662 = vtanh.pop %v1640
  %v1663 = vtanh.pop %v1641
  %v1664 = vmul.f32 %v1648, %v1646
  %v1665 = vmul.f32 %v1649, %v1647
  %v1666 = vmul.f32 %v1650, %v1646
  %v1667 = vmul.f32 %v1651, %v1647
  %v1668 = vmul.f32 %v1652, %v1646
  %v1669 = vmul.f32 %v1653, %v1647
  %v1670 = vmul.f32 %v1654, %v1646
  %v1671 = vmul.f32 %v1655, %v1647
  %v1672 = vmul.f32 %v1656, %v1646
  %v1673 = vmul.f32 %v1657, %v1647
  %v1674 = vmul.f32 %v1658, %v1646
  %v1675 = vmul.f32 %v1659, %v1647
  %v1676 = vmul.f32 %v1660, %v1646
  %v1677 = vmul.f32 %v1661, %v1647
  %v1678 = vmul.f32 %v1662, %v1646
  %v1679 = vmul.f32 %v1663, %v1647
  %v1680 = vadd.f32 %v1664, %v1665
  %v1681 = vrot.slane %v1680, 4
  %v1682 = vadd.f32 %v1680, %v1681
  %v1683 = vrot.slane %v1682, 2
  %v1684 = vadd.f32 %v1682, %v1683
  %v1685 = vrot.slane %v1684, 1
  %v1686 = vadd.f32 %v1684, %v1685
  %v1687 = vadd.f32 %v1666, %v1667
  %v1688 = vrot.slane %v1687, 4
  %v1689 = vadd.f32 %v1687, %v1688
  %v1690 = vrot.slane %v1689, 2
  %v1691 = vadd.f32 %v1689, %v1690
  %v1692 = vrot.slane %v1691, 1
  %v1693 = vadd.f32 %v1691, %v1692
  %v1694 = vadd.f32 %v1668, %v1669
  %v1695 = vrot.slane %v1694, 4
  %v1696 = vadd.f32 %v1694, %v1695
  %v1697 = vrot.slane %v1696, 2
  %v1698 = vadd.f32 %v1696, %v1697
  %v1699 = vrot.slane %v1698, 1
  %v1700 = vadd.f32 %v1698, %v1699
  %v1701 = vadd.f32 %v1670, %v1671
  %v1702 = vrot.slane %v1701, 4
  %v1703 = vadd.f32 %v1701, %v1702
  %v1704 = vrot.slane %v1703, 2
  %v1705 = vadd.f32 %v1703, %v1704
  %v1706 = vrot.slane %v1705, 1
  %v1707 = vadd.f32 %v1705, %v1706
  %v1708 = vadd.f32 %v1672, %v1673
  %v1709 = vrot.slane %v1708, 4
  %v1710 = vadd.f32 %v1708, %v1709
  %v1711 = vrot.slane %v1710, 2
  %v1712 = vadd.f32 %v1710, %v1711
  %v1713 = vrot.slane %v1712, 1
  %v1714 = vadd.f32 %v1712, %v1713
  %v1715 = vadd.f32 %v1674, %v1675
  %v1716 = vrot.slane %v1715, 4
  %v1717 = vadd.f32 %v1715, %v1716
  %v1718 = vrot.slane %v1717, 2
  %v1719 = vadd.f32 %v1717, %v1718
  %v1720 = vrot.slane %v1719, 1
  %v1721 = vadd.f32 %v1719, %v1720
  %v1722 = vadd.f32 %v1676, %v1677
  %v1723 = vrot.slane %v1722, 4
  %v1724 = vadd.f32 %v1722, %v1723
  %v1725 = vrot.slane %v1724, 2
  %v1726 = vadd.f32 %v1724, %v1725
  %v1727 = vrot.slane %v1726, 1
  %v1728 = vadd.f32 %v1726, %v1727
  %v1729 = vadd.f32 %v1678, %v1679
  %v1730 = vrot.slane %v1729, 4
  %v1731 = vadd.f32 %v1729, %v1730
  %v1732 = vrot.slane %v1731, 2
  %v1733 = vadd.f32 %v1731, %v1732
  %v1734 = vrot.slane %v1733, 1
  %v1735 = vadd.f32 %v1733, %v1734
  %v1736 = vtanh.pop %v1686
  %v1737 = vtanh.pop %v1693
  %v1738 = vtanh.pop %v1700
  %v1739 = vtanh.pop %v1707
  %v1740 = vtanh.pop %v1714
  %v1741 = vtanh.pop %v1721
  %v1742 = vtanh.pop %v1728
  %v1743 = vtanh.pop %v1735
  %vm1752 = vcmask 1041409
  %v1753 = vsel %vm1752, %v1149, %v1148
  %vm1754 = vcmask 1042434
  %v1755 = vsel %vm1754, %v1150, %v1753
  %vm1756 = vcmask 1043459
  %v1757 = vsel %vm1756, %v1151, %v1755
  %vm1758 = vcmask 1044484
  %v1759 = vsel %vm1758, %v1152, %v1757
  %vm1760 = vcmask 1045509
  %v1761 = vsel %vm1760, %v1153, %v1759
  %vm1762 = vcmask 1046534
  %v1763 = vsel %vm1762, %v1154, %v1761
  %vm1764 = vcmask 1047559
  %v1765 = vsel %vm1764, %v1155, %v1763
  %v1775 = vsel %vm1752, %v1419, %v1418
  %v1776 = vsel %vm1754, %v1420, %v1775
  %v1777 = vsel %vm1756, %v1421, %v1776
  %v1778 = vsel %vm1758, %v1422, %v1777
  %v1779 = vsel %vm1760, %v1423, %v1778
  %v1780 = vsel %vm1762, %v1424, %v1779
  %v1781 = vsel %vm1764, %v1425, %v1780
  %v1791 = vsel %vm1752, %v1737, %v1736
  %v1792 = vsel %vm1754, %v1738, %v1791
  %v1793 = vsel %vm1756, %v1739, %v1792
  %v1794 = vsel %vm1758, %v1740, %v1793
  %v1795 = vsel %vm1760, %v1741, %v1794
  %v1796 = vsel %vm1762, %v1742, %v1795
  %v1797 = vsel %vm1764, %v1743, %v1796
  %v1799 = vpack.c.bf16 %v1765, %v1765
  %v1800 = vpack.c.bf16 %v1781, %v1781
  %v1801 = vpack.c.bf16 %v1797, %v1797
  %v1802 = vld [vmem:[%s5] sm:$0xf]
  %v1803 = vld [vmem:[%s5 + $0x4] sm:$0xf]
  %v1804 = vld [vmem:[%s5 + $0x8] sm:$0xf]
  %v1805 = vld [vmem:[%s5 + $0xc] sm:$0xf]
  %v1806 = vld [vmem:[%s5 + $0x10] sm:$0xf]
  %v1807 = vld [vmem:[%s5 + $0x14] sm:$0xf]
  %v1808 = vld [vmem:[%s5 + $0x18] sm:$0xf]
  %v1809 = vld [vmem:[%s5 + $0x1c] sm:$0xf]
  %v1810 = vld [vmem:[%s5 + $0x20] sm:$0xf]
  %v1811 = vld [vmem:[%s5 + $0x24] sm:$0xf]
  %v1812 = vld [vmem:[%s5 + $0x28] sm:$0xf]
  %v1813 = vld [vmem:[%s5 + $0x2c] sm:$0xf]
  %v1814 = vld [vmem:[%s5 + $0x30] sm:$0xf]
  %v1815 = vld [vmem:[%s5 + $0x34] sm:$0xf]
  %v1816 = vld [vmem:[%s5 + $0x38] sm:$0xf]
  %v1817 = vld [vmem:[%s5 + $0x3c] sm:$0xf]
  %v1818 = vld [vmem:[%s5 + $0x40] sm:$0xf]
  %v1819 = vld [vmem:[%s5 + $0x44] sm:$0xf]
  %v1820 = vld [vmem:[%s5 + $0x48] sm:$0xf]
  %v1821 = vld [vmem:[%s5 + $0x4c] sm:$0xf]
  %v1822 = vld [vmem:[%s5 + $0x50] sm:$0xf]
  %v1823 = vld [vmem:[%s5 + $0x54] sm:$0xf]
  %v1824 = vld [vmem:[%s5 + $0x58] sm:$0xf]
  %v1825 = vld [vmem:[%s5 + $0x5c] sm:$0xf]
  %v1826 = vld [vmem:[%s5 + $0x60] sm:$0xf]
  %v1827 = vld [vmem:[%s5 + $0x64] sm:$0xf]
  %v1828 = vld [vmem:[%s5 + $0x68] sm:$0xf]
  %v1829 = vld [vmem:[%s5 + $0x6c] sm:$0xf]
  %v1830 = vld [vmem:[%s5 + $0x70] sm:$0xf]
  %v1831 = vld [vmem:[%s5 + $0x74] sm:$0xf]
  %v1832 = vld [vmem:[%s5 + $0x78] sm:$0xf]
  %v1833 = vld [vmem:[%s5 + $0x7c] sm:$0xf]
  %v1834 = vld [vmem:[%s5 + $0x80] sm:$0xf]
  %v1835 = vld [vmem:[%s5 + $0x84] sm:$0xf]
  %v1836 = vld [vmem:[%s5 + $0x88] sm:$0xf]
  %v1837 = vld [vmem:[%s5 + $0x8c] sm:$0xf]
  %v1838 = vld [vmem:[%s5 + $0x90] sm:$0xf]
  %v1839 = vld [vmem:[%s5 + $0x94] sm:$0xf]
  %v1840 = vld [vmem:[%s5 + $0x98] sm:$0xf]
  %v1841 = vld [vmem:[%s5 + $0x9c] sm:$0xf]
  %v1842 = vld [vmem:[%s5 + $0xa0] sm:$0xf]
  %v1843 = vld [vmem:[%s5 + $0xa4] sm:$0xf]
  %v1844 = vld [vmem:[%s5 + $0xa8] sm:$0xf]
  %v1845 = vld [vmem:[%s5 + $0xac] sm:$0xf]
  %v1846 = vld [vmem:[%s5 + $0xb0] sm:$0xf]
  %v1847 = vld [vmem:[%s5 + $0xb4] sm:$0xf]
  %v1848 = vld [vmem:[%s5 + $0xb8] sm:$0xf]
  %v1849 = vld [vmem:[%s5 + $0xbc] sm:$0xf]
  %v1850 = vld [vmem:[%s6] sm:$0x1]
  %v1852 = vlaneseq
  %v1853 = vshrl.u32 %v1852, 7
  %v1854 = vsub.s32 0, %v1853
  %v1855 = vrot.slane %v1850, %v1854
  %v1905 = vunpack.c.l.b16 %v1802
  %v1906 = vunpack.c.l.b16 %v1803
  %v1907 = vunpack.c.l.b16 %v1804
  %v1908 = vunpack.c.l.b16 %v1805
  %v1909 = vunpack.c.l.b16 %v1806
  %v1910 = vunpack.c.l.b16 %v1807
  %v1911 = vunpack.c.l.b16 %v1808
  %v1912 = vunpack.c.l.b16 %v1809
  %v1913 = vunpack.c.l.b16 %v1810
  %v1914 = vunpack.c.l.b16 %v1811
  %v1915 = vunpack.c.l.b16 %v1812
  %v1916 = vunpack.c.l.b16 %v1813
  %v1917 = vunpack.c.l.b16 %v1814
  %v1918 = vunpack.c.l.b16 %v1815
  %v1919 = vunpack.c.l.b16 %v1816
  %v1920 = vunpack.c.l.b16 %v1817
  %v1921 = vunpack.c.l.b16 %v1818
  %v1922 = vunpack.c.l.b16 %v1819
  %v1923 = vunpack.c.l.b16 %v1820
  %v1924 = vunpack.c.l.b16 %v1821
  %v1925 = vunpack.c.l.b16 %v1822
  %v1926 = vunpack.c.l.b16 %v1823
  %v1927 = vunpack.c.l.b16 %v1824
  %v1928 = vunpack.c.l.b16 %v1825
  %v1929 = vunpack.c.l.b16 %v1826
  %v1930 = vunpack.c.l.b16 %v1827
  %v1931 = vunpack.c.l.b16 %v1828
  %v1932 = vunpack.c.l.b16 %v1829
  %v1933 = vunpack.c.l.b16 %v1830
  %v1934 = vunpack.c.l.b16 %v1831
  %v1935 = vunpack.c.l.b16 %v1832
  %v1936 = vunpack.c.l.b16 %v1833
  %v1937 = vunpack.c.l.b16 %v1834
  %v1938 = vunpack.c.l.b16 %v1835
  %v1939 = vunpack.c.l.b16 %v1836
  %v1940 = vunpack.c.l.b16 %v1837
  %v1941 = vunpack.c.l.b16 %v1838
  %v1942 = vunpack.c.l.b16 %v1839
  %v1943 = vunpack.c.l.b16 %v1840
  %v1944 = vunpack.c.l.b16 %v1841
  %v1945 = vunpack.c.l.b16 %v1842
  %v1946 = vunpack.c.l.b16 %v1843
  %v1947 = vunpack.c.l.b16 %v1844
  %v1948 = vunpack.c.l.b16 %v1845
  %v1949 = vunpack.c.l.b16 %v1846
  %v1950 = vunpack.c.l.b16 %v1847
  %v1951 = vunpack.c.l.b16 %v1848
  %v1952 = vunpack.c.l.b16 %v1849
  %v1953 = vpack.c.b16 %v1906, %v1905
  %v1954 = vpack.c.b16 %v1908, %v1907
  %v1955 = vpack.c.b16 %v1910, %v1909
  %v1956 = vpack.c.b16 %v1912, %v1911
  %v1957 = vpack.c.b16 %v1914, %v1913
  %v1958 = vpack.c.b16 %v1916, %v1915
  %v1959 = vpack.c.b16 %v1918, %v1917
  %v1960 = vpack.c.b16 %v1920, %v1919
  %v1961 = vpack.c.b16 %v1922, %v1921
  %v1962 = vpack.c.b16 %v1924, %v1923
  %v1963 = vpack.c.b16 %v1926, %v1925
  %v1964 = vpack.c.b16 %v1928, %v1927
  %v1965 = vpack.c.b16 %v1930, %v1929
  %v1966 = vpack.c.b16 %v1932, %v1931
  %v1967 = vpack.c.b16 %v1934, %v1933
  %v1968 = vpack.c.b16 %v1936, %v1935
  %v1969 = vpack.c.b16 %v1938, %v1937
  %v1970 = vpack.c.b16 %v1940, %v1939
  %v1971 = vpack.c.b16 %v1942, %v1941
  %v1972 = vpack.c.b16 %v1944, %v1943
  %v1973 = vpack.c.b16 %v1946, %v1945
  %v1974 = vpack.c.b16 %v1948, %v1947
  %v1975 = vpack.c.b16 %v1950, %v1949
  %v1976 = vpack.c.b16 %v1952, %v1951
  %2001 = vmatprep.subr.bf16.mxu0 0
  %2002 = vmatpush1.bf16.msra.mxu0 %v1953
  %2003 = vmatprep.subr.bf16.mxu0 0
  %2004 = vmatpush1.bf16.msra.mxu0 %v1954
  %2005 = vmatprep.subr.bf16.mxu0 0
  %2006 = vmatpush1.bf16.msra.mxu0 %v1955
  %2007 = vmatprep.subr.bf16.mxu0 0
  %2008 = vmatpush1.bf16.msra.mxu0 %v1956
  %2009 = vmatprep.subr.bf16.mxu0 0
  %2010 = vmatpush1.bf16.msra.mxu0 %v1957
  %2011 = vmatprep.subr.bf16.mxu0 0
  %2012 = vmatpush1.bf16.msra.mxu0 %v1958
  %2013 = vmatprep.subr.bf16.mxu0 0
  %2014 = vmatpush1.bf16.msra.mxu0 %v1959
  %2015 = vmatprep.subr.bf16.mxu0 0
  %2016 = vmatpush1.bf16.msra.mxu0 %v1960
  %2017 = vmatprep.subr.bf16.mxu0 0
  %2018 = vmatpush1.bf16.msra.mxu0 %v1961
  %2019 = vmatprep.subr.bf16.mxu0 0
  %2020 = vmatpush1.bf16.msra.mxu0 %v1962
  %2021 = vmatprep.subr.bf16.mxu0 0
  %2022 = vmatpush1.bf16.msra.mxu0 %v1963
  %2023 = vmatprep.subr.bf16.mxu0 0
  %2024 = vmatpush1.bf16.msra.mxu0 %v1964
  %2025 = vmatprep.subr.bf16.mxu0 0
  %2026 = vmatpush1.bf16.msra.mxu0 %v1965
  %2027 = vmatprep.subr.bf16.mxu0 0
  %2028 = vmatpush1.bf16.msra.mxu0 %v1966
  %2029 = vmatprep.subr.bf16.mxu0 0
  %2030 = vmatpush1.bf16.msra.mxu0 %v1967
  %2031 = vmatprep.subr.bf16.mxu0 0
  %2032 = vmatpush1.bf16.msra.mxu0 %v1968
  %2033 = vmatprep.mubr.bf16.mxu0 %v1800
  %2034 = vmatmul.mubr.bf16.gmra.mrb[0].mxu0 %v1799
  %v2035 = vpop.f32.mrb[0].mxu0
  %v2036 = vadd.f32 %v1855, %v2035
  %v2037 = vpop.f32.mrb[0].mxu0
  %v2038 = vpop.f32.mrb[0].mxu0
  %v2039 = vpop.f32.mrb[0].mxu0
  %2040 = vdwg.mxu0
  %2041 = vmatprep.subr.bf16.mxu0 0
  %2042 = vmatpush1.bf16.msra.mxu0 %v1969
  %2043 = vmatprep.subr.bf16.mxu0 0
  %2044 = vmatpush1.bf16.msra.mxu0 %v1970
  %2045 = vmatprep.subr.bf16.mxu0 0
  %2046 = vmatpush1.bf16.msra.mxu0 %v1971
  %2047 = vmatprep.subr.bf16.mxu0 0
  %2048 = vmatpush1.bf16.msra.mxu0 %v1972
  %2049 = vmatprep.subr.bf16.mxu0 0
  %2050 = vmatpush1.bf16.msra.mxu0 %v1973
  %2051 = vmatprep.subr.bf16.mxu0 0
  %2052 = vmatpush1.bf16.msra.mxu0 %v1974
  %2053 = vmatprep.subr.bf16.mxu0 0
  %2054 = vmatpush1.bf16.msra.mxu0 %v1975
  %2055 = vmatprep.subr.bf16.mxu0 0
  %2056 = vmatpush1.bf16.msra.mxu0 %v1976
  %2057 = vmatprep.subr.bf16.mxu0 0
  %2058 = vmatpush1.bf16.msra.mxu0 0
  %2059 = vmatprep.subr.bf16.mxu0 0
  %2060 = vmatpush1.bf16.msra.mxu0 0
  %2061 = vmatprep.subr.bf16.mxu0 0
  %2062 = vmatpush1.bf16.msra.mxu0 0
  %2063 = vmatprep.subr.bf16.mxu0 0
  %2064 = vmatpush1.bf16.msra.mxu0 0
  %2065 = vmatprep.subr.bf16.mxu0 0
  %2066 = vmatpush1.bf16.msra.mxu0 0
  %2067 = vmatprep.subr.bf16.mxu0 0
  %2068 = vmatpush1.bf16.msra.mxu0 0
  %2069 = vmatprep.subr.bf16.mxu0 0
  %2070 = vmatpush1.bf16.msra.mxu0 0
  %2071 = vmatprep.subr.bf16.mxu0 0
  %2072 = vmatpush1.bf16.msra.mxu0 0
  %2073 = vmatprep.mubr.bf16.mxu0 0
  %2074 = vmatmul.mubr.bf16.gmra.mrb[0].mxu0 %v1801
  %v2075 = vpop.f32.mrb[0].mxu0
  %v2076 = vadd.f32 %v2036, %v2075
  %v2077 = vpop.f32.mrb[0].mxu0
  %v2078 = vpop.f32.mrb[0].mxu0
  %v2079 = vpop.f32.mrb[0].mxu0
  %2080 = vdwg.mxu0
  %2081 = vst [vmem:[%s7] sm:$0xff] %v2076
  // Predicated region
  $region30: #{cnn_text_forward.1} parent=0 // pred_check
    _
  $region31: #{cnn_text_forward.1} parent=0 // pred_check_branch
    %2083 = sbr.rel (0) target = $region33
  $region32: #{cnn_text_forward.1} parent=0 // pred_region
    _
  $region33: #{cnn_text_forward.1} parent=0 // pred_fallthru
    _
  // Predicated region
  $region34: #{cnn_text_forward.1} parent=0 // pred_check
    _
  $region35: #{cnn_text_forward.1} parent=0 // pred_check_branch
    %2085 = sbr.rel (0) target = $region37
  $region36: #{cnn_text_forward.1} parent=0 // pred_region
    _
  $region37: #{cnn_text_forward.1} parent=0 // pred_fallthru
    _

</llo_original>
